<compile_context>
chip_gen: v6e
topology: v6e:2x2x1
jax: 0.10.0
libtpu: 0.0.40
codegen_flags: <defaults>
</compile_context>

<pallas_src>
import functools

import jax
import jax.numpy as jnp
from jax.experimental import pallas as pl
from jax.experimental.pallas import tpu as pltpu


def _round_up(a, b):
    return -(-a // b) * b


def _conv3x3_kernel(x_ref, w_ref, b_ref, scale_ref, shift_ref, mask_ref,
                    o_ref, sum_ref, ssq_ref, *, W, fuse_bn_relu):
    """3x3 / pad=1 conv for one image, channels-first, pixels on lanes.

    x_ref:     (1, C_in, HW)     input image (channels zero-padded to 8k)
    w_ref:     (C_out, 9*C_in)   tap-major flattened weights
    b_ref:     (C_out, 1)        conv bias (f32)
    scale_ref: (C_in, 1)         fused input-BN scale  (used iff fuse_bn_relu)
    shift_ref: (C_in, 1)         fused input-BN shift
    mask_ref:  (9, HW)           per-tap validity mask (row-valid & col-valid)
    o_ref:     (1, C_out, HW)    conv output (+ bias)
    sum_ref:   (1, C_out, 1)     per-channel sum of this image's output   (f32)
    ssq_ref:   (1, C_out, 1)     per-channel sum of squares               (f32)
    """
    C_in, HW = x_ref.shape[1], x_ref.shape[2]
    x = x_ref[0]
    if fuse_bn_relu:
        # BatchNorm (precomputed per-channel scale/shift) + ReLU of the
        # previous conv, applied on the fly to this conv's input.
        x = jnp.maximum(x * scale_ref[...] + shift_ref[...], 0.0)

    # Lane-aligned zero pad built in VMEM so every shifted view is a static
    # slice; pad contents only have to be finite because the tap mask kills
    # every out-of-image / row-wrapped contribution on the input side.
    pad = _round_up(W + 1, 128)
    zeros = jnp.zeros((C_in, pad), x.dtype)
    xp = jnp.concatenate([zeros, x, zeros], axis=1)          # (C_in, HW + 2*pad)

    # im2col-lite: stack the 9 shifted views along the contraction axis,
    # masking invalid pixels on the (C_in, HW) input rows, not the output.
    parts = []
    k = 0
    for dh in (-1, 0, 1):
        for dw in (-1, 0, 1):
            s = pad + dh * W + dw                            # static flat offset
            xk = xp[:, s:s + HW]
            if dh != 0 or dw != 0:                           # center mask is all-ones
                xk = xk * mask_ref[k:k + 1, :]
            parts.append(xk)
            k += 1
    xs = jnp.concatenate(parts, axis=0)                      # (9*C_in, HW)

    # Single full-depth MXU matmul (K = 9*C_in), f32 accumulation.
    y = jnp.dot(w_ref[...], xs, preferred_element_type=jnp.float32)
    y = y + b_ref[...]

    o_ref[0] = y.astype(o_ref.dtype)
    # BatchNorm batch-statistic partials: nearly free, y is already resident.
    sum_ref[0] = jnp.sum(y, axis=1, keepdims=True)
    ssq_ref[0] = jnp.sum(y * y, axis=1, keepdims=True)


def _conv3x3(x, w_flat, bias, scale, shift, tapmask, *, W, fuse_bn_relu):
    N, C_in, HW = x.shape
    C_out, K9 = w_flat.shape
    kern = functools.partial(_conv3x3_kernel, W=W, fuse_bn_relu=fuse_bn_relu)
    itemsize = x.dtype.itemsize
    cost = pl.CostEstimate(
        flops=2 * N * HW * C_out * K9,
        transcendentals=0,
        bytes_accessed=(x.size + N * C_out * HW + w_flat.size + tapmask.size)
        * itemsize + 2 * N * C_out * 4,
    )
    return pl.pallas_call(
        kern,
        out_shape=(
            jax.ShapeDtypeStruct((N, C_out, HW), x.dtype),
            jax.ShapeDtypeStruct((N, C_out, 1), jnp.float32),
            jax.ShapeDtypeStruct((N, C_out, 1), jnp.float32),
        ),
        grid=(N,),
        in_specs=[
            pl.BlockSpec((1, C_in, HW), lambda n: (n, 0, 0)),
            # grid-invariant operands (constant index_map)
            pl.BlockSpec((C_out, K9), lambda n: (0, 0)),
            pl.BlockSpec((C_out, 1), lambda n: (0, 0)),
            pl.BlockSpec((C_in, 1), lambda n: (0, 0)),
            pl.BlockSpec((C_in, 1), lambda n: (0, 0)),
            pl.BlockSpec((9, HW), lambda n: (0, 0)),
        ],
        out_specs=(
            pl.BlockSpec((1, C_out, HW), lambda n: (n, 0, 0)),
            pl.BlockSpec((1, C_out, 1), lambda n: (n, 0, 0)),
            pl.BlockSpec((1, C_out, 1), lambda n: (n, 0, 0)),
        ),
        compiler_params=pltpu.CompilerParams(dimension_semantics=("parallel",)),
        cost_estimate=cost,
    )(x, w_flat, bias.reshape(C_out, 1).astype(jnp.float32), scale, shift, tapmask)


def _bn_relu_kernel(x_ref, scale_ref, shift_ref, o_ref):
    o_ref[0] = jnp.maximum(
        x_ref[0] * scale_ref[...] + shift_ref[...], 0.0).astype(o_ref.dtype)


def _bn_relu(x, scale, shift):
    N, C, HW = x.shape
    cost = pl.CostEstimate(flops=3 * N * C * HW, transcendentals=0,
                           bytes_accessed=2 * x.size * x.dtype.itemsize)
    return pl.pallas_call(
        _bn_relu_kernel,
        out_shape=jax.ShapeDtypeStruct((N, C, HW), x.dtype),
        grid=(N,),
        in_specs=[
            pl.BlockSpec((1, C, HW), lambda n: (n, 0, 0)),
            pl.BlockSpec((C, 1), lambda n: (0, 0)),
            pl.BlockSpec((C, 1), lambda n: (0, 0)),
        ],
        out_specs=pl.BlockSpec((1, C, HW), lambda n: (n, 0, 0)),
        compiler_params=pltpu.CompilerParams(dimension_semantics=("parallel",)),
        cost_estimate=cost,
    )(x, scale, shift)


def _tap_masks(H, W, dt):
    """(9, H*W) validity mask per 3x3 tap: 1 iff (h+dh, w+dw) is inside image."""
    HW = H * W
    row = jnp.arange(HW, dtype=jnp.int32) // W
    col = jnp.arange(HW, dtype=jnp.int32) % W
    masks = []
    for dh in (-1, 0, 1):
        for dw in (-1, 0, 1):
            ok = ((row + dh >= 0) & (row + dh < H) &
                  (col + dw >= 0) & (col + dw < W))
            masks.append(ok.astype(dt))
    return jnp.stack(masks, axis=0)


def _flatten_weight(w, c_in_p):
    """OIHW (C_out, C_in, 3, 3) -> (C_out, 9*c_in_p), tap-major then channel."""
    C_out, C_in = w.shape[0], w.shape[1]
    wt = jnp.transpose(w, (0, 2, 3, 1))                      # (C_out, 3, 3, C_in)
    if c_in_p != C_in:
        wt = jnp.pad(wt, ((0, 0), (0, 0), (0, 0), (0, c_in_p - C_in)))
    return wt.reshape(C_out, 9 * c_in_p)


def _bn_params(sums, ssqs, gamma, beta, count, eps, dt):
    """BatchNorm (training-mode, biased var) scale/shift from f32 partial sums."""
    s = jnp.sum(sums, axis=0)[:, 0].astype(jnp.float32)      # (C,)
    q = jnp.sum(ssqs, axis=0)[:, 0].astype(jnp.float32)
    mean = s / count
    var = jnp.maximum(q / count - mean * mean, 0.0)
    inv = gamma.astype(jnp.float32) / jnp.sqrt(var + eps)
    scale = inv.reshape(-1, 1).astype(dt)
    shift = (beta.astype(jnp.float32) - mean * inv).reshape(-1, 1).astype(dt)
    return scale, shift


def double_conv_pallas(x, w1, b1, g1, beta1, w2, b2, g2, beta2, *, eps=1e-5):
    """DoubleConv forward.

    x:  (N, C_in, H, W)
    w1: (C_mid, C_in, 3, 3), b1/g1/beta1: (C_mid,)
    w2: (C_out, C_mid, 3, 3), b2/g2/beta2: (C_out,)
    BatchNorm uses per-batch statistics (nn.BatchNorm2d training-mode forward).
    returns (N, C_out, H, W)
    """
    N, C_in, H, W = x.shape
    C_mid, C_out = w1.shape[0], w2.shape[0]
    HW = H * W
    dt = x.dtype
    count = N * HW

    tapmask = _tap_masks(H, W, dt)                           # (9, HW), grid-invariant

    # ---- conv1 ------------------------------------------------------------
    C_in_p = _round_up(C_in, 8)                              # sublane-aligned stack
    x_flat = x.reshape(N, C_in, HW)                          # free reshape, stays NCHW
    if C_in_p != C_in:
        x_flat = jnp.pad(x_flat, ((0, 0), (0, C_in_p - C_in), (0, 0)))
    w1_flat = _flatten_weight(w1, C_in_p).astype(dt)         # (C_mid, 9*C_in_p)
    ident_scale = jnp.ones((C_in_p, 1), dt)
    ident_shift = jnp.zeros((C_in_p, 1), dt)
    y1, sum1, ssq1 = _conv3x3(x_flat, w1_flat, b1, ident_scale, ident_shift,
                              tapmask, W=W, fuse_bn_relu=False)

    # ---- BN1 scale/shift from in-kernel partial sums -----------------------
    scale1, shift1 = _bn_params(sum1, ssq1, g1, beta1, count, eps, dt)

    # ---- conv2 with BN1 + ReLU fused onto its input ------------------------
    C_mid_p = _round_up(C_mid, 8)
    if C_mid_p != C_mid:
        # TODO(synk): avoid this copy by emitting channel-padded conv1 output.
        y1 = jnp.pad(y1, ((0, 0), (0, C_mid_p - C_mid), (0, 0)))
        scale1 = jnp.pad(scale1, ((0, C_mid_p - C_mid), (0, 0)))
        shift1 = jnp.pad(shift1, ((0, C_mid_p - C_mid), (0, 0)))
    w2_flat = _flatten_weight(w2, C_mid_p).astype(dt)        # (C_out, 9*C_mid_p)
    y2, sum2, ssq2 = _conv3x3(y1, w2_flat, b2, scale1, shift1,
                              tapmask, W=W, fuse_bn_relu=True)

    # ---- BN2 + ReLU ---------------------------------------------------------
    scale2, shift2 = _bn_params(sum2, ssq2, g2, beta2, count, eps, dt)
    out = _bn_relu(y2, scale2, shift2)                       # (N, C_out, HW)
    return out.reshape(N, C_out, H, W)


def _reference(x, w1, b1, g1, beta1, w2, b2, g2, beta2, eps=1e-5):
    def conv(x, w, b):
        y = jax.lax.conv_general_dilated(
            x, w, window_strides=(1, 1), padding=((1, 1), (1, 1)),
            dimension_numbers=("NCHW", "OIHW", "NCHW"),
            precision=jax.lax.Precision.HIGHEST)
        return y + b[None, :, None, None]

    def bn_relu(x, g, b):
        m = x.mean(axis=(0, 2, 3), keepdims=True)
        v = x.var(axis=(0, 2, 3), keepdims=True)
        y = g[None, :, None, None] * (x - m) / jnp.sqrt(v + eps) + b[None, :, None, None]
        return jnp.maximum(y, 0.0)

    return bn_relu(conv(bn_relu(conv(x, w1, b1), g1, beta1), w2, b2), g2, beta2)


if __name__ == "__main__":
    key = jax.random.PRNGKey(0)
    k_x, k_w1, k_w2 = jax.random.split(key, 3)

    N, C_in, H, W = 2, 4, 16, 16
    C_out = 8
    C_mid = C_out                       # DoubleConv default: mid_channels = out_channels

    x = jax.random.normal(k_x, (N, C_in, H, W), dtype=jnp.float32)

    # init_weights: Conv2d -> kaiming_normal_(fan_in), bias=0; BatchNorm2d -> weight=1, bias=0.
    std1 = (2.0 / (C_in * 3 * 3)) ** 0.5
    std2 = (2.0 / (C_mid * 3 * 3)) ** 0.5
    w1 = std1 * jax.random.normal(k_w1, (C_mid, C_in, 3, 3), dtype=jnp.float32)
    b1 = jnp.zeros((C_mid,), jnp.float32)
    g1 = jnp.ones((C_mid,), jnp.float32)
    beta1 = jnp.zeros((C_mid,), jnp.float32)
    w2 = std2 * jax.random.normal(k_w2, (C_out, C_mid, 3, 3), dtype=jnp.float32)
    b2 = jnp.zeros((C_out,), jnp.float32)
    g2 = jnp.ones((C_out,), jnp.float32)
    beta2 = jnp.zeros((C_out,), jnp.float32)

    fwd = jax.jit(double_conv_pallas)
    y = jax.block_until_ready(fwd(x, w1, b1, g1, beta1, w2, b2, g2, beta2))

    y_ref = _reference(x, w1, b1, g1, beta1, w2, b2, g2, beta2)
    assert y.shape == (N, C_out, H, W), y.shape
    err = float(jnp.max(jnp.abs(y - y_ref)))
    assert jnp.allclose(y, y_ref, atol=1e-3, rtol=1e-3), f"mismatch vs reference: {err}"

    print("KERNEL_OK")
</pallas_src>

<mosaic_0001>
module attributes {stable_mosaic.version = 11 : i64} {
  func.func @_conv3x3_kernel(%arg0: i32, %arg1: memref<1x8x256xf32, #tpu.memory_space<vmem>>, %arg2: memref<8x72xf32, #tpu.memory_space<vmem>>, %arg3: memref<8x1xf32, #tpu.memory_space<vmem>>, %arg4: memref<8x1xf32, #tpu.memory_space<vmem>>, %arg5: memref<8x1xf32, #tpu.memory_space<vmem>>, %arg6: memref<9x256xf32, #tpu.memory_space<vmem>>, %arg7: memref<1x8x256xf32, #tpu.memory_space<vmem>>, %arg8: memref<1x8x1xf32, #tpu.memory_space<vmem>>, %arg9: memref<1x8x1xf32, #tpu.memory_space<vmem>>) attributes {dimension_semantics = [#tpu.dimension_semantics<parallel>], iteration_bounds = array<i64: 2>, scalar_prefetch = 0 : i64, scratch_operands = 0 : i64, tpu.core_type = #tpu.core_type<tc>, window_params = [{transform_indices = @transform_0, window_bounds = array<i64: 1, 8, 256>}, {pipeline_mode = #tpu.pipeline_mode<synchronous>, transform_indices = @transform_1, window_bounds = array<i64: 8, 72>}, {pipeline_mode = #tpu.pipeline_mode<synchronous>, transform_indices = @transform_2, window_bounds = array<i64: 8, 1>}, {pipeline_mode = #tpu.pipeline_mode<synchronous>, transform_indices = @transform_3, window_bounds = array<i64: 8, 1>}, {pipeline_mode = #tpu.pipeline_mode<synchronous>, transform_indices = @transform_4, window_bounds = array<i64: 8, 1>}, {pipeline_mode = #tpu.pipeline_mode<synchronous>, transform_indices = @transform_5, window_bounds = array<i64: 9, 256>}, {transform_indices = @transform_6, window_bounds = array<i64: 1, 8, 256>}, {transform_indices = @transform_7, window_bounds = array<i64: 1, 8, 1>}, {transform_indices = @transform_8, window_bounds = array<i64: 1, 8, 1>}]} {
    %c0 = arith.constant 0 : index
    %c0_0 = arith.constant 0 : index
    %c0_1 = arith.constant 0 : index
    %0 = vector.load %arg1[%c0, %c0_0, %c0_1] : memref<1x8x256xf32, #tpu.memory_space<vmem>>, vector<1x8x256xf32>
    %1 = vector.shape_cast %0 : vector<1x8x256xf32> to vector<8x256xf32>
    %c0_2 = arith.constant 0 : index
    %c0_3 = arith.constant 0 : index
    %2 = vector.load %arg4[%c0_2, %c0_3] : memref<8x1xf32, #tpu.memory_space<vmem>>, vector<8x1xf32>
    %3 = vector.broadcast %2 : vector<8x1xf32> to vector<8x256xf32>
    %4 = arith.mulf %1, %3 : vector<8x256xf32>
    %c0_4 = arith.constant 0 : index
    %c0_5 = arith.constant 0 : index
    %5 = vector.load %arg5[%c0_4, %c0_5] : memref<8x1xf32, #tpu.memory_space<vmem>>, vector<8x1xf32>
    %6 = vector.broadcast %5 : vector<8x1xf32> to vector<8x256xf32>
    %7 = arith.addf %4, %6 : vector<8x256xf32>
    %cst = arith.constant 0.000000e+00 : f32
    %8 = vector.broadcast %cst : f32 to vector<8x256xf32>
    %9 = arith.maximumf %7, %8 : vector<8x256xf32>
    %cst_6 = arith.constant 0.000000e+00 : f32
    %10 = vector.broadcast %cst_6 : f32 to vector<8x128xf32>
    %11 = tpu.concatenate %10, %9, %10 in 1 : vector<8x128xf32>, vector<8x256xf32>, vector<8x128xf32> -> vector<8x512xf32>
    %12 = vector.extract_strided_slice %11 {offsets = [0, 111], sizes = [8, 256], strides = [1, 1]} : vector<8x512xf32> to vector<8x256xf32>
    %c0_7 = arith.constant 0 : index
    %c0_8 = arith.constant 0 : index
    %13 = vector.load %arg6[%c0_7, %c0_8] : memref<9x256xf32, #tpu.memory_space<vmem>>, vector<1x256xf32>
    %14 = vector.broadcast %13 : vector<1x256xf32> to vector<8x256xf32>
    %15 = arith.mulf %12, %14 : vector<8x256xf32>
    %16 = vector.extract_strided_slice %11 {offsets = [0, 112], sizes = [8, 256], strides = [1, 1]} : vector<8x512xf32> to vector<8x256xf32>
    %c1 = arith.constant 1 : index
    %c0_9 = arith.constant 0 : index
    %17 = vector.load %arg6[%c1, %c0_9] : memref<9x256xf32, #tpu.memory_space<vmem>>, vector<1x256xf32>
    %18 = vector.broadcast %17 : vector<1x256xf32> to vector<8x256xf32>
    %19 = arith.mulf %16, %18 : vector<8x256xf32>
    %20 = vector.extract_strided_slice %11 {offsets = [0, 113], sizes = [8, 256], strides = [1, 1]} : vector<8x512xf32> to vector<8x256xf32>
    %c2 = arith.constant 2 : index
    %c0_10 = arith.constant 0 : index
    %21 = vector.load %arg6[%c2, %c0_10] : memref<9x256xf32, #tpu.memory_space<vmem>>, vector<1x256xf32>
    %22 = vector.broadcast %21 : vector<1x256xf32> to vector<8x256xf32>
    %23 = arith.mulf %20, %22 : vector<8x256xf32>
    %24 = vector.extract_strided_slice %11 {offsets = [0, 127], sizes = [8, 256], strides = [1, 1]} : vector<8x512xf32> to vector<8x256xf32>
    %c3 = arith.constant 3 : index
    %c0_11 = arith.constant 0 : index
    %25 = vector.load %arg6[%c3, %c0_11] : memref<9x256xf32, #tpu.memory_space<vmem>>, vector<1x256xf32>
    %26 = vector.broadcast %25 : vector<1x256xf32> to vector<8x256xf32>
    %27 = arith.mulf %24, %26 : vector<8x256xf32>
    %28 = vector.extract_strided_slice %11 {offsets = [0, 128], sizes = [8, 256], strides = [1, 1]} : vector<8x512xf32> to vector<8x256xf32>
    %29 = vector.extract_strided_slice %11 {offsets = [0, 129], sizes = [8, 256], strides = [1, 1]} : vector<8x512xf32> to vector<8x256xf32>
    %c5 = arith.constant 5 : index
    %c0_12 = arith.constant 0 : index
    %30 = vector.load %arg6[%c5, %c0_12] : memref<9x256xf32, #tpu.memory_space<vmem>>, vector<1x256xf32>
    %31 = vector.broadcast %30 : vector<1x256xf32> to vector<8x256xf32>
    %32 = arith.mulf %29, %31 : vector<8x256xf32>
    %33 = vector.extract_strided_slice %11 {offsets = [0, 143], sizes = [8, 256], strides = [1, 1]} : vector<8x512xf32> to vector<8x256xf32>
    %c6 = arith.constant 6 : index
    %c0_13 = arith.constant 0 : index
    %34 = vector.load %arg6[%c6, %c0_13] : memref<9x256xf32, #tpu.memory_space<vmem>>, vector<1x256xf32>
    %35 = vector.broadcast %34 : vector<1x256xf32> to vector<8x256xf32>
    %36 = arith.mulf %33, %35 : vector<8x256xf32>
    %37 = vector.extract_strided_slice %11 {offsets = [0, 144], sizes = [8, 256], strides = [1, 1]} : vector<8x512xf32> to vector<8x256xf32>
    %c7 = arith.constant 7 : index
    %c0_14 = arith.constant 0 : index
    %38 = vector.load %arg6[%c7, %c0_14] : memref<9x256xf32, #tpu.memory_space<vmem>>, vector<1x256xf32>
    %39 = vector.broadcast %38 : vector<1x256xf32> to vector<8x256xf32>
    %40 = arith.mulf %37, %39 : vector<8x256xf32>
    %41 = vector.extract_strided_slice %11 {offsets = [0, 145], sizes = [8, 256], strides = [1, 1]} : vector<8x512xf32> to vector<8x256xf32>
    %c8 = arith.constant 8 : index
    %c0_15 = arith.constant 0 : index
    %42 = vector.load %arg6[%c8, %c0_15] : memref<9x256xf32, #tpu.memory_space<vmem>>, vector<1x256xf32>
    %43 = vector.broadcast %42 : vector<1x256xf32> to vector<8x256xf32>
    %44 = arith.mulf %41, %43 : vector<8x256xf32>
    %45 = tpu.concatenate %15, %19, %23, %27, %28, %32, %36, %40, %44 in 0 : vector<8x256xf32>, vector<8x256xf32>, vector<8x256xf32>, vector<8x256xf32>, vector<8x256xf32>, vector<8x256xf32>, vector<8x256xf32>, vector<8x256xf32>, vector<8x256xf32> -> vector<72x256xf32>
    %c0_16 = arith.constant 0 : index
    %c0_17 = arith.constant 0 : index
    %46 = vector.load %arg2[%c0_16, %c0_17] : memref<8x72xf32, #tpu.memory_space<vmem>>, vector<8x72xf32>
    %cst_18 = arith.constant dense<0.000000e+00> : vector<8x256xf32>
    %47 = tpu.matmul %46, %45, %cst_18 {dimension_numbers = #tpu.dot_dimension_numbers<[1], [0], [0], [1], [0, 0, 1, 1], [], []>} : vector<8x72xf32>, vector<72x256xf32>, vector<8x256xf32> -> vector<8x256xf32>
    %c0_19 = arith.constant 0 : index
    %c0_20 = arith.constant 0 : index
    %48 = vector.load %arg3[%c0_19, %c0_20] : memref<8x1xf32, #tpu.memory_space<vmem>>, vector<8x1xf32>
    %49 = vector.broadcast %48 : vector<8x1xf32> to vector<8x256xf32>
    %50 = arith.addf %47, %49 : vector<8x256xf32>
    %c0_21 = arith.constant 0 : index
    %c0_22 = arith.constant 0 : index
    %c0_23 = arith.constant 0 : index
    %51 = vector.load %arg7[%c0_21, %c0_22, %c0_23] : memref<1x8x256xf32, #tpu.memory_space<vmem>>, vector<1x8x256xf32>
    %52 = vector.shape_cast %51 : vector<1x8x256xf32> to vector<8x256xf32>
    %53 = vector.shape_cast %50 : vector<8x256xf32> to vector<1x8x256xf32>
    tpu.vector_store %arg7[%c0_21, %c0_22, %c0_23], %53 {strides = array<i32>} : memref<1x8x256xf32, #tpu.memory_space<vmem>>, vector<1x8x256xf32>,
    %cst_24 = arith.constant dense<0.000000e+00> : vector<8xf32>
    %54 = vector.multi_reduction <add>, %50, %cst_24 [1] : vector<8x256xf32> to vector<8xf32>
    %55 = vector.shape_cast %54 : vector<8xf32> to vector<8x1xf32>
    %c0_25 = arith.constant 0 : index
    %c0_26 = arith.constant 0 : index
    %c0_27 = arith.constant 0 : index
    %56 = vector.load %arg8[%c0_25, %c0_26, %c0_27] : memref<1x8x1xf32, #tpu.memory_space<vmem>>, vector<1x8x1xf32>
    %57 = vector.shape_cast %56 : vector<1x8x1xf32> to vector<8x1xf32>
    %58 = vector.shape_cast %55 : vector<8x1xf32> to vector<1x8x1xf32>
    tpu.vector_store %arg8[%c0_25, %c0_26, %c0_27], %58 {strides = array<i32>} : memref<1x8x1xf32, #tpu.memory_space<vmem>>, vector<1x8x1xf32>,
    %59 = arith.mulf %50, %50 : vector<8x256xf32>
    %cst_28 = arith.constant dense<0.000000e+00> : vector<8xf32>
    %60 = vector.multi_reduction <add>, %59, %cst_28 [1] : vector<8x256xf32> to vector<8xf32>
    %61 = vector.shape_cast %60 : vector<8xf32> to vector<8x1xf32>
    %c0_29 = arith.constant 0 : index
    %c0_30 = arith.constant 0 : index
    %c0_31 = arith.constant 0 : index
    %62 = vector.load %arg9[%c0_29, %c0_30, %c0_31] : memref<1x8x1xf32, #tpu.memory_space<vmem>>, vector<1x8x1xf32>
    %63 = vector.shape_cast %62 : vector<1x8x1xf32> to vector<8x1xf32>
    %64 = vector.shape_cast %61 : vector<8x1xf32> to vector<1x8x1xf32>
    tpu.vector_store %arg9[%c0_29, %c0_30, %c0_31], %64 {strides = array<i32>} : memref<1x8x1xf32, #tpu.memory_space<vmem>>, vector<1x8x1xf32>,
    return
  }
  func.func @transform_0(%arg0: i32) -> (i32, i32, i32) {
    %c0_i32 = arith.constant 0 : i32
    %c0_i32_0 = arith.constant 0 : i32
    %c0_i32_1 = arith.constant 0 : i32
    return %arg0, %c0_i32, %c0_i32_0 : i32, i32, i32
  }
  func.func @transform_1(%arg0: i32) -> (i32, i32) {
    %c0_i32 = arith.constant 0 : i32
    %c0_i32_0 = arith.constant 0 : i32
    %c0_i32_1 = arith.constant 0 : i32
    return %c0_i32, %c0_i32_0 : i32, i32
  }
  func.func @transform_2(%arg0: i32) -> (i32, i32) {
    %c0_i32 = arith.constant 0 : i32
    %c0_i32_0 = arith.constant 0 : i32
    %c0_i32_1 = arith.constant 0 : i32
    return %c0_i32, %c0_i32_0 : i32, i32
  }
  func.func @transform_3(%arg0: i32) -> (i32, i32) {
    %c0_i32 = arith.constant 0 : i32
    %c0_i32_0 = arith.constant 0 : i32
    %c0_i32_1 = arith.constant 0 : i32
    return %c0_i32, %c0_i32_0 : i32, i32
  }
  func.func @transform_4(%arg0: i32) -> (i32, i32) {
    %c0_i32 = arith.constant 0 : i32
    %c0_i32_0 = arith.constant 0 : i32
    %c0_i32_1 = arith.constant 0 : i32
    return %c0_i32, %c0_i32_0 : i32, i32
  }
  func.func @transform_5(%arg0: i32) -> (i32, i32) {
    %c0_i32 = arith.constant 0 : i32
    %c0_i32_0 = arith.constant 0 : i32
    %c0_i32_1 = arith.constant 0 : i32
    return %c0_i32, %c0_i32_0 : i32, i32
  }
  func.func @transform_6(%arg0: i32) -> (i32, i32, i32) {
    %c0_i32 = arith.constant 0 : i32
    %c0_i32_0 = arith.constant 0 : i32
    %c0_i32_1 = arith.constant 0 : i32
    return %arg0, %c0_i32, %c0_i32_0 : i32, i32, i32
  }
  func.func @transform_7(%arg0: i32) -> (i32, i32, i32) {
    %c0_i32 = arith.constant 0 : i32
    %c0_i32_0 = arith.constant 0 : i32
    %c0_i32_1 = arith.constant 0 : i32
    return %arg0, %c0_i32, %c0_i32_0 : i32, i32, i32
  }
  func.func @transform_8(%arg0: i32) -> (i32, i32, i32) {
    %c0_i32 = arith.constant 0 : i32
    %c0_i32_0 = arith.constant 0 : i32
    %c0_i32_1 = arith.constant 0 : i32
    return %arg0, %c0_i32, %c0_i32_0 : i32, i32, i32
  }
}

module attributes {stable_mosaic.version = 11 : i64} {
  func.func @_conv3x3_kernel(%arg0: i32, %arg1: memref<1x8x256xf32, #tpu.memory_space<vmem>>, %arg2: memref<8x72xf32, #tpu.memory_space<vmem>>, %arg3: memref<8x1xf32, #tpu.memory_space<vmem>>, %arg4: memref<8x1xf32, #tpu.memory_space<vmem>>, %arg5: memref<8x1xf32, #tpu.memory_space<vmem>>, %arg6: memref<9x256xf32, #tpu.memory_space<vmem>>, %arg7: memref<1x8x256xf32, #tpu.memory_space<vmem>>, %arg8: memref<1x8x1xf32, #tpu.memory_space<vmem>>, %arg9: memref<1x8x1xf32, #tpu.memory_space<vmem>>) attributes {dimension_semantics = [#tpu.dimension_semantics<parallel>], iteration_bounds = array<i64: 2>, scalar_prefetch = 0 : i64, scratch_operands = 0 : i64, tpu.core_type = #tpu.core_type<tc>, window_params = [{transform_indices = @transform_0, window_bounds = array<i64: 1, 8, 256>}, {pipeline_mode = #tpu.pipeline_mode<synchronous>, transform_indices = @transform_1, window_bounds = array<i64: 8, 72>}, {pipeline_mode = #tpu.pipeline_mode<synchronous>, transform_indices = @transform_2, window_bounds = array<i64: 8, 1>}, {pipeline_mode = #tpu.pipeline_mode<synchronous>, transform_indices = @transform_3, window_bounds = array<i64: 8, 1>}, {pipeline_mode = #tpu.pipeline_mode<synchronous>, transform_indices = @transform_4, window_bounds = array<i64: 8, 1>}, {pipeline_mode = #tpu.pipeline_mode<synchronous>, transform_indices = @transform_5, window_bounds = array<i64: 9, 256>}, {transform_indices = @transform_6, window_bounds = array<i64: 1, 8, 256>}, {transform_indices = @transform_7, window_bounds = array<i64: 1, 8, 1>}, {transform_indices = @transform_8, window_bounds = array<i64: 1, 8, 1>}]} {
    %c0 = arith.constant 0 : index
    %c0_0 = arith.constant 0 : index
    %c0_1 = arith.constant 0 : index
    %0 = vector.load %arg1[%c0, %c0_0, %c0_1] : memref<1x8x256xf32, #tpu.memory_space<vmem>>, vector<1x8x256xf32>
    %1 = vector.shape_cast %0 : vector<1x8x256xf32> to vector<8x256xf32>
    %cst = arith.constant 0.000000e+00 : f32
    %2 = vector.broadcast %cst : f32 to vector<8x128xf32>
    %3 = tpu.concatenate %2, %1, %2 in 1 : vector<8x128xf32>, vector<8x256xf32>, vector<8x128xf32> -> vector<8x512xf32>
    %4 = vector.extract_strided_slice %3 {offsets = [0, 111], sizes = [8, 256], strides = [1, 1]} : vector<8x512xf32> to vector<8x256xf32>
    %c0_2 = arith.constant 0 : index
    %c0_3 = arith.constant 0 : index
    %5 = vector.load %arg6[%c0_2, %c0_3] : memref<9x256xf32, #tpu.memory_space<vmem>>, vector<1x256xf32>
    %6 = vector.broadcast %5 : vector<1x256xf32> to vector<8x256xf32>
    %7 = arith.mulf %4, %6 : vector<8x256xf32>
    %8 = vector.extract_strided_slice %3 {offsets = [0, 112], sizes = [8, 256], strides = [1, 1]} : vector<8x512xf32> to vector<8x256xf32>
    %c1 = arith.constant 1 : index
    %c0_4 = arith.constant 0 : index
    %9 = vector.load %arg6[%c1, %c0_4] : memref<9x256xf32, #tpu.memory_space<vmem>>, vector<1x256xf32>
    %10 = vector.broadcast %9 : vector<1x256xf32> to vector<8x256xf32>
    %11 = arith.mulf %8, %10 : vector<8x256xf32>
    %12 = vector.extract_strided_slice %3 {offsets = [0, 113], sizes = [8, 256], strides = [1, 1]} : vector<8x512xf32> to vector<8x256xf32>
    %c2 = arith.constant 2 : index
    %c0_5 = arith.constant 0 : index
    %13 = vector.load %arg6[%c2, %c0_5] : memref<9x256xf32, #tpu.memory_space<vmem>>, vector<1x256xf32>
    %14 = vector.broadcast %13 : vector<1x256xf32> to vector<8x256xf32>
    %15 = arith.mulf %12, %14 : vector<8x256xf32>
    %16 = vector.extract_strided_slice %3 {offsets = [0, 127], sizes = [8, 256], strides = [1, 1]} : vector<8x512xf32> to vector<8x256xf32>
    %c3 = arith.constant 3 : index
    %c0_6 = arith.constant 0 : index
    %17 = vector.load %arg6[%c3, %c0_6] : memref<9x256xf32, #tpu.memory_space<vmem>>, vector<1x256xf32>
    %18 = vector.broadcast %17 : vector<1x256xf32> to vector<8x256xf32>
    %19 = arith.mulf %16, %18 : vector<8x256xf32>
    %20 = vector.extract_strided_slice %3 {offsets = [0, 128], sizes = [8, 256], strides = [1, 1]} : vector<8x512xf32> to vector<8x256xf32>
    %21 = vector.extract_strided_slice %3 {offsets = [0, 129], sizes = [8, 256], strides = [1, 1]} : vector<8x512xf32> to vector<8x256xf32>
    %c5 = arith.constant 5 : index
    %c0_7 = arith.constant 0 : index
    %22 = vector.load %arg6[%c5, %c0_7] : memref<9x256xf32, #tpu.memory_space<vmem>>, vector<1x256xf32>
    %23 = vector.broadcast %22 : vector<1x256xf32> to vector<8x256xf32>
    %24 = arith.mulf %21, %23 : vector<8x256xf32>
    %25 = vector.extract_strided_slice %3 {offsets = [0, 143], sizes = [8, 256], strides = [1, 1]} : vector<8x512xf32> to vector<8x256xf32>
    %c6 = arith.constant 6 : index
    %c0_8 = arith.constant 0 : index
    %26 = vector.load %arg6[%c6, %c0_8] : memref<9x256xf32, #tpu.memory_space<vmem>>, vector<1x256xf32>
    %27 = vector.broadcast %26 : vector<1x256xf32> to vector<8x256xf32>
    %28 = arith.mulf %25, %27 : vector<8x256xf32>
    %29 = vector.extract_strided_slice %3 {offsets = [0, 144], sizes = [8, 256], strides = [1, 1]} : vector<8x512xf32> to vector<8x256xf32>
    %c7 = arith.constant 7 : index
    %c0_9 = arith.constant 0 : index
    %30 = vector.load %arg6[%c7, %c0_9] : memref<9x256xf32, #tpu.memory_space<vmem>>, vector<1x256xf32>
    %31 = vector.broadcast %30 : vector<1x256xf32> to vector<8x256xf32>
    %32 = arith.mulf %29, %31 : vector<8x256xf32>
    %33 = vector.extract_strided_slice %3 {offsets = [0, 145], sizes = [8, 256], strides = [1, 1]} : vector<8x512xf32> to vector<8x256xf32>
    %c8 = arith.constant 8 : index
    %c0_10 = arith.constant 0 : index
    %34 = vector.load %arg6[%c8, %c0_10] : memref<9x256xf32, #tpu.memory_space<vmem>>, vector<1x256xf32>
    %35 = vector.broadcast %34 : vector<1x256xf32> to vector<8x256xf32>
    %36 = arith.mulf %33, %35 : vector<8x256xf32>
    %37 = tpu.concatenate %7, %11, %15, %19, %20, %24, %28, %32, %36 in 0 : vector<8x256xf32>, vector<8x256xf32>, vector<8x256xf32>, vector<8x256xf32>, vector<8x256xf32>, vector<8x256xf32>, vector<8x256xf32>, vector<8x256xf32>, vector<8x256xf32> -> vector<72x256xf32>
    %c0_11 = arith.constant 0 : index
    %c0_12 = arith.constant 0 : index
    %38 = vector.load %arg2[%c0_11, %c0_12] : memref<8x72xf32, #tpu.memory_space<vmem>>, vector<8x72xf32>
    %cst_13 = arith.constant dense<0.000000e+00> : vector<8x256xf32>
    %39 = tpu.matmul %38, %37, %cst_13 {dimension_numbers = #tpu.dot_dimension_numbers<[1], [0], [0], [1], [0, 0, 1, 1], [], []>} : vector<8x72xf32>, vector<72x256xf32>, vector<8x256xf32> -> vector<8x256xf32>
    %c0_14 = arith.constant 0 : index
    %c0_15 = arith.constant 0 : index
    %40 = vector.load %arg3[%c0_14, %c0_15] : memref<8x1xf32, #tpu.memory_space<vmem>>, vector<8x1xf32>
    %41 = vector.broadcast %40 : vector<8x1xf32> to vector<8x256xf32>
    %42 = arith.addf %39, %41 : vector<8x256xf32>
    %c0_16 = arith.constant 0 : index
    %c0_17 = arith.constant 0 : index
    %c0_18 = arith.constant 0 : index
    %43 = vector.load %arg7[%c0_16, %c0_17, %c0_18] : memref<1x8x256xf32, #tpu.memory_space<vmem>>, vector<1x8x256xf32>
    %44 = vector.shape_cast %43 : vector<1x8x256xf32> to vector<8x256xf32>
    %45 = vector.shape_cast %42 : vector<8x256xf32> to vector<1x8x256xf32>
    tpu.vector_store %arg7[%c0_16, %c0_17, %c0_18], %45 {strides = array<i32>} : memref<1x8x256xf32, #tpu.memory_space<vmem>>, vector<1x8x256xf32>,
    %cst_19 = arith.constant dense<0.000000e+00> : vector<8xf32>
    %46 = vector.multi_reduction <add>, %42, %cst_19 [1] : vector<8x256xf32> to vector<8xf32>
    %47 = vector.shape_cast %46 : vector<8xf32> to vector<8x1xf32>
    %c0_20 = arith.constant 0 : index
    %c0_21 = arith.constant 0 : index
    %c0_22 = arith.constant 0 : index
    %48 = vector.load %arg8[%c0_20, %c0_21, %c0_22] : memref<1x8x1xf32, #tpu.memory_space<vmem>>, vector<1x8x1xf32>
    %49 = vector.shape_cast %48 : vector<1x8x1xf32> to vector<8x1xf32>
    %50 = vector.shape_cast %47 : vector<8x1xf32> to vector<1x8x1xf32>
    tpu.vector_store %arg8[%c0_20, %c0_21, %c0_22], %50 {strides = array<i32>} : memref<1x8x1xf32, #tpu.memory_space<vmem>>, vector<1x8x1xf32>,
    %51 = arith.mulf %42, %42 : vector<8x256xf32>
    %cst_23 = arith.constant dense<0.000000e+00> : vector<8xf32>
    %52 = vector.multi_reduction <add>, %51, %cst_23 [1] : vector<8x256xf32> to vector<8xf32>
    %53 = vector.shape_cast %52 : vector<8xf32> to vector<8x1xf32>
    %c0_24 = arith.constant 0 : index
    %c0_25 = arith.constant 0 : index
    %c0_26 = arith.constant 0 : index
    %54 = vector.load %arg9[%c0_24, %c0_25, %c0_26] : memref<1x8x1xf32, #tpu.memory_space<vmem>>, vector<1x8x1xf32>
    %55 = vector.shape_cast %54 : vector<1x8x1xf32> to vector<8x1xf32>
    %56 = vector.shape_cast %53 : vector<8x1xf32> to vector<1x8x1xf32>
    tpu.vector_store %arg9[%c0_24, %c0_25, %c0_26], %56 {strides = array<i32>} : memref<1x8x1xf32, #tpu.memory_space<vmem>>, vector<1x8x1xf32>,
    return
  }
  func.func @transform_0(%arg0: i32) -> (i32, i32, i32) {
    %c0_i32 = arith.constant 0 : i32
    %c0_i32_0 = arith.constant 0 : i32
    %c0_i32_1 = arith.constant 0 : i32
    return %arg0, %c0_i32, %c0_i32_0 : i32, i32, i32
  }
  func.func @transform_1(%arg0: i32) -> (i32, i32) {
    %c0_i32 = arith.constant 0 : i32
    %c0_i32_0 = arith.constant 0 : i32
    %c0_i32_1 = arith.constant 0 : i32
    return %c0_i32, %c0_i32_0 : i32, i32
  }
  func.func @transform_2(%arg0: i32) -> (i32, i32) {
    %c0_i32 = arith.constant 0 : i32
    %c0_i32_0 = arith.constant 0 : i32
    %c0_i32_1 = arith.constant 0 : i32
    return %c0_i32, %c0_i32_0 : i32, i32
  }
  func.func @transform_3(%arg0: i32) -> (i32, i32) {
    %c0_i32 = arith.constant 0 : i32
    %c0_i32_0 = arith.constant 0 : i32
    %c0_i32_1 = arith.constant 0 : i32
    return %c0_i32, %c0_i32_0 : i32, i32
  }
  func.func @transform_4(%arg0: i32) -> (i32, i32) {
    %c0_i32 = arith.constant 0 : i32
    %c0_i32_0 = arith.constant 0 : i32
    %c0_i32_1 = arith.constant 0 : i32
    return %c0_i32, %c0_i32_0 : i32, i32
  }
  func.func @transform_5(%arg0: i32) -> (i32, i32) {
    %c0_i32 = arith.constant 0 : i32
    %c0_i32_0 = arith.constant 0 : i32
    %c0_i32_1 = arith.constant 0 : i32
    return %c0_i32, %c0_i32_0 : i32, i32
  }
  func.func @transform_6(%arg0: i32) -> (i32, i32, i32) {
    %c0_i32 = arith.constant 0 : i32
    %c0_i32_0 = arith.constant 0 : i32
    %c0_i32_1 = arith.constant 0 : i32
    return %arg0, %c0_i32, %c0_i32_0 : i32, i32, i32
  }
  func.func @transform_7(%arg0: i32) -> (i32, i32, i32) {
    %c0_i32 = arith.constant 0 : i32
    %c0_i32_0 = arith.constant 0 : i32
    %c0_i32_1 = arith.constant 0 : i32
    return %arg0, %c0_i32, %c0_i32_0 : i32, i32, i32
  }
  func.func @transform_8(%arg0: i32) -> (i32, i32, i32) {
    %c0_i32 = arith.constant 0 : i32
    %c0_i32_0 = arith.constant 0 : i32
    %c0_i32_1 = arith.constant 0 : i32
    return %arg0, %c0_i32, %c0_i32_0 : i32, i32, i32
  }
}

module attributes {stable_mosaic.version = 11 : i64} {
  func.func @_bn_relu_kernel(%arg0: i32, %arg1: memref<1x8x256xf32, #tpu.memory_space<vmem>>, %arg2: memref<8x1xf32, #tpu.memory_space<vmem>>, %arg3: memref<8x1xf32, #tpu.memory_space<vmem>>, %arg4: memref<1x8x256xf32, #tpu.memory_space<vmem>>) attributes {dimension_semantics = [#tpu.dimension_semantics<parallel>], iteration_bounds = array<i64: 2>, scalar_prefetch = 0 : i64, scratch_operands = 0 : i64, tpu.core_type = #tpu.core_type<tc>, window_params = [{transform_indices = @transform_0, window_bounds = array<i64: 1, 8, 256>}, {pipeline_mode = #tpu.pipeline_mode<synchronous>, transform_indices = @transform_1, window_bounds = array<i64: 8, 1>}, {pipeline_mode = #tpu.pipeline_mode<synchronous>, transform_indices = @transform_2, window_bounds = array<i64: 8, 1>}, {transform_indices = @transform_3, window_bounds = array<i64: 1, 8, 256>}]} {
    %c0 = arith.constant 0 : index
    %c0_0 = arith.constant 0 : index
    %c0_1 = arith.constant 0 : index
    %0 = vector.load %arg1[%c0, %c0_0, %c0_1] : memref<1x8x256xf32, #tpu.memory_space<vmem>>, vector<1x8x256xf32>
    %1 = vector.shape_cast %0 : vector<1x8x256xf32> to vector<8x256xf32>
    %c0_2 = arith.constant 0 : index
    %c0_3 = arith.constant 0 : index
    %2 = vector.load %arg2[%c0_2, %c0_3] : memref<8x1xf32, #tpu.memory_space<vmem>>, vector<8x1xf32>
    %3 = vector.broadcast %2 : vector<8x1xf32> to vector<8x256xf32>
    %4 = arith.mulf %1, %3 : vector<8x256xf32>
    %c0_4 = arith.constant 0 : index
    %c0_5 = arith.constant 0 : index
    %5 = vector.load %arg3[%c0_4, %c0_5] : memref<8x1xf32, #tpu.memory_space<vmem>>, vector<8x1xf32>
    %6 = vector.broadcast %5 : vector<8x1xf32> to vector<8x256xf32>
    %7 = arith.addf %4, %6 : vector<8x256xf32>
    %cst = arith.constant 0.000000e+00 : f32
    %8 = vector.broadcast %cst : f32 to vector<8x256xf32>
    %9 = arith.maximumf %7, %8 : vector<8x256xf32>
    %c0_6 = arith.constant 0 : index
    %c0_7 = arith.constant 0 : index
    %c0_8 = arith.constant 0 : index
    %10 = vector.load %arg4[%c0_6, %c0_7, %c0_8] : memref<1x8x256xf32, #tpu.memory_space<vmem>>, vector<1x8x256xf32>
    %11 = vector.shape_cast %10 : vector<1x8x256xf32> to vector<8x256xf32>
    %12 = vector.shape_cast %9 : vector<8x256xf32> to vector<1x8x256xf32>
    tpu.vector_store %arg4[%c0_6, %c0_7, %c0_8], %12 {strides = array<i32>} : memref<1x8x256xf32, #tpu.memory_space<vmem>>, vector<1x8x256xf32>,
    return
  }
  func.func @transform_0(%arg0: i32) -> (i32, i32, i32) {
    %c0_i32 = arith.constant 0 : i32
    %c0_i32_0 = arith.constant 0 : i32
    %c0_i32_1 = arith.constant 0 : i32
    return %arg0, %c0_i32, %c0_i32_0 : i32, i32, i32
  }
  func.func @transform_1(%arg0: i32) -> (i32, i32) {
    %c0_i32 = arith.constant 0 : i32
    %c0_i32_0 = arith.constant 0 : i32
    %c0_i32_1 = arith.constant 0 : i32
    return %c0_i32, %c0_i32_0 : i32, i32
  }
  func.func @transform_2(%arg0: i32) -> (i32, i32) {
    %c0_i32 = arith.constant 0 : i32
    %c0_i32_0 = arith.constant 0 : i32
    %c0_i32_1 = arith.constant 0 : i32
    return %c0_i32, %c0_i32_0 : i32, i32
  }
  func.func @transform_3(%arg0: i32) -> (i32, i32, i32) {
    %c0_i32 = arith.constant 0 : i32
    %c0_i32_0 = arith.constant 0 : i32
    %c0_i32_1 = arith.constant 0 : i32
    return %arg0, %c0_i32, %c0_i32_0 : i32, i32, i32
  }
}

</mosaic_0001>

<llo_original>
// kernel: double_conv_pallas.5
$region0: #{double_conv_pallas.5}
  #allocation0 [shape = 'u32[]', space=smem, size = 0x4, offset = 0x4, fixed_abs, tag = 'smem constant byte address 0x4 - core index']
  #allocation1 [shape = 'u32[144,128]{1,0:T(1,128)}', space=vmem, size = 0x12000, scoped, tag = 'internal scratch']
  %s0 = inlined_call_operand.vmem [shape: f32[2,8,256], index: 0, kind: input, shape index: {}]
  %s1 = inlined_call_operand.vmem [shape: f32[8,1], index: 1, kind: input, shape index: {}]
  %s2 = inlined_call_operand.vmem [shape: f32[8,1], index: 2, kind: input, shape index: {}]
  %s3 = inlined_call_operand.vmem [shape: f32[2,8,256], index: 3, kind: output, shape index: {}]
  %s4 = sld [smem:[#allocation0]]
  $region45: #{double_conv_pallas.5} parent=0
    _
  %s6 = ssub.s32 1, %s4
  %s7 = scalar_select 0, %s6, %s4
  loop: start=0, step=1, limit=4
  $region2: #{double_conv_pallas.5} parent=0 // loop_pre_header
    _
  $region3: #{double_conv_pallas.5} parent=0 // loop_header
    %s9 = sphi 0, %s13
    %p10 = scmp.ge.s32.totalorder %s9, 4
    %s19 = sphi 0, %s21
    %s22 = sphi 0, %s19
    %s23 = sphi 0, %s22
    %s39 = sphi 0, %s23
    %s43 = sphi 0, %s43
    %s45 = sphi 0, %s43
    %s46 = sphi 0, %s45
    %s60 = sphi 0, %s46
    %s64 = sphi 0, %s64
    %s66 = sphi 0, %s64
    %s67 = sphi 0, %s66
    %s81 = sphi 0, %s67
    %s87 = sphi 0, %s89
    %s90 = sphi 0, %s87
    %s91 = sphi 0, %s90
    %s107 = sphi 0, %s91
  $region4: #{double_conv_pallas.5} parent=0 // loop_header_branch
    %12 = sbr.rel (%p10) target = $region8
  $region5: #{double_conv_pallas.5} parent=0 // loop_body
    %s14 = ssub.s32 %s9, 1
    %s15 = ssub.s32 %s9, 2
    %s16 = sadd.s32 %s9, 1
    %s17 = ssub.s32 %s9, %s16
    %p18 = scmp.eq.s32.totalorder %s17, 0
    %s20 = sadd.s32 %s19, 1
    %s21 = scalar_select %p18, %s19, %s20
    %p24 = pneg %p18
    %p25 = scmp.eq.s32.totalorder %s9, 1
    %p26 = por %p24, %p25
    %p27 = scmp.ne.s32.totalorder %s19, %s22
    %p28 = scmp.eq.s32.totalorder %s9, 0
    %p29 = por %p27, %p28
    %p30 = scmp.ne.s32.totalorder %s19, %s22
    %p31 = scmp.eq.s32.totalorder %s14, 1
    %p32 = por %p30, %p31
    %p33 = scmp.ne.s32.totalorder %s22, %s23
    %p34 = scmp.eq.s32.totalorder %s14, 0
    %p35 = por %p33, %p34
    %p36 = scmp.ne.s32.totalorder %s22, %s23
    %p37 = scmp.eq.s32.totalorder %s15, 1
    %p38 = por %p36, %p37
    %p40 = scmp.ne.s32.totalorder %s23, %s39
    %p41 = scmp.eq.s32.totalorder %s15, 0
    %p42 = por %p40, %p41
    %s44 = sadd.s32 %s43, 1
    %p47 = scmp.eq.s32.totalorder %s9, 1
    %p48 = scmp.ne.s32.totalorder %s43, %s45
    %p49 = scmp.eq.s32.totalorder %s9, 0
    %p50 = por %p48, %p49
    %p51 = scmp.ne.s32.totalorder %s43, %s45
    %p52 = scmp.eq.s32.totalorder %s14, 1
    %p53 = por %p51, %p52
    %p54 = scmp.ne.s32.totalorder %s45, %s46
    %p55 = scmp.eq.s32.totalorder %s14, 0
    %p56 = por %p54, %p55
    %p57 = scmp.ne.s32.totalorder %s45, %s46
    %p58 = scmp.eq.s32.totalorder %s15, 1
    %p59 = por %p57, %p58
    %p61 = scmp.ne.s32.totalorder %s46, %s60
    %p62 = scmp.eq.s32.totalorder %s15, 0
    %p63 = por %p61, %p62
    %s65 = sadd.s32 %s64, 1
    %p68 = scmp.eq.s32.totalorder %s9, 1
    %p69 = scmp.ne.s32.totalorder %s64, %s66
    %p70 = scmp.eq.s32.totalorder %s9, 0
    %p71 = por %p69, %p70
    %p72 = scmp.ne.s32.totalorder %s64, %s66
    %p73 = scmp.eq.s32.totalorder %s14, 1
    %p74 = por %p72, %p73
    %p75 = scmp.ne.s32.totalorder %s66, %s67
    %p76 = scmp.eq.s32.totalorder %s14, 0
    %p77 = por %p75, %p76
    %p78 = scmp.ne.s32.totalorder %s66, %s67
    %p79 = scmp.eq.s32.totalorder %s15, 1
    %p80 = por %p78, %p79
    %p82 = scmp.ne.s32.totalorder %s67, %s81
    %p83 = scmp.eq.s32.totalorder %s15, 0
    %p84 = por %p82, %p83
    %s85 = ssub.s32 %s9, %s16
    %p86 = scmp.eq.s32.totalorder %s85, 0
    %s88 = sadd.s32 %s87, 1
    %s89 = scalar_select %p86, %s87, %s88
    %p92 = pneg %p86
    %p93 = scmp.eq.s32.totalorder %s9, 1
    %p94 = por %p92, %p93
    %p95 = scmp.ne.s32.totalorder %s87, %s90
    %p96 = scmp.eq.s32.totalorder %s9, 0
    %p97 = por %p95, %p96
    %p98 = scmp.ne.s32.totalorder %s87, %s90
    %p99 = scmp.eq.s32.totalorder %s14, 1
    %p100 = por %p98, %p99
    %p101 = scmp.ne.s32.totalorder %s90, %s91
    %p102 = scmp.eq.s32.totalorder %s14, 0
    %p103 = por %p101, %p102
    %p104 = scmp.ne.s32.totalorder %s90, %s91
    %p105 = scmp.eq.s32.totalorder %s15, 1
    %p106 = por %p104, %p105
    %p108 = scmp.ne.s32.totalorder %s91, %s107
    %p109 = scmp.eq.s32.totalorder %s15, 0
    %p110 = por %p108, %p109
    %p111 = scmp.le.s32.totalorder 1, %s9
    %p112 = scmp.lt.s32.totalorder %s9, 3
    %p113 = pnand %p111, %p112
    %p114 = pneg %p113
    // Predicated region
    $region9: #{double_conv_pallas.5} parent=5 // pred_check
      _
    $region10: #{double_conv_pallas.5} parent=5 // pred_check_branch
      %116 = sbr.rel (%p113) target = $region12
    $region11: #{double_conv_pallas.5} parent=5 // pred_region
      %s117 = ssub.s32 %s9, 1
      // Predicated region
      $region13: #{double_conv_pallas.5} parent=11 // pred_check
        %p118 = pneg %p56
      $region14: #{double_conv_pallas.5} parent=11 // pred_check_branch
        %120 = sbr.rel (%p118) target = $region16
      $region15: #{double_conv_pallas.5} parent=11 // pred_region
        _
      $region16: #{double_conv_pallas.5} parent=11 // pred_fallthru
        _
      // Predicated region
      $region17: #{double_conv_pallas.5} parent=11 // pred_check
        %p121 = pneg %p77
      $region18: #{double_conv_pallas.5} parent=11 // pred_check_branch
        %123 = sbr.rel (%p121) target = $region20
      $region19: #{double_conv_pallas.5} parent=11 // pred_region
        _
      $region20: #{double_conv_pallas.5} parent=11 // pred_fallthru
        _
    $region12: #{double_conv_pallas.5} parent=5 // pred_fallthru
      _
    %p124 = scmp.lt.s32.totalorder %s9, 2
    // Predicated region
    $region21: #{double_conv_pallas.5} parent=5 // pred_check
      %p125 = pneg %p124
    $region22: #{double_conv_pallas.5} parent=5 // pred_check_branch
      %127 = sbr.rel (%p125) target = $region24
    $region23: #{double_conv_pallas.5} parent=5 // pred_region
      // Predicated region
      $region25: #{double_conv_pallas.5} parent=23 // pred_check
        %p128 = pneg %p29
      $region26: #{double_conv_pallas.5} parent=23 // pred_check_branch
        %130 = sbr.rel (%p128) target = $region28
      $region27: #{double_conv_pallas.5} parent=23 // pred_region
        %p131 = scmp.lt.s32.totalorder %s9, 1
        %s132 = scalar_select %p131, %s9, 1
        %s133 = smul.addr %s132, 2
        %s134 = smul.addr %s133, 8
        %s135 = scalar_lea.vmem %s0, %s134
      $region28: #{double_conv_pallas.5} parent=23 // pred_fallthru
        _
    $region24: #{double_conv_pallas.5} parent=5 // pred_fallthru
      _
    %p136 = scmp.le.s32.totalorder 1, %s9
    %p137 = scmp.lt.s32.totalorder %s9, 3
    %p138 = pnand %p136, %p137
    %p139 = pneg %p138
    // Predicated region
    $region29: #{double_conv_pallas.5} parent=5 // pred_check
      _
    $region30: #{double_conv_pallas.5} parent=5 // pred_check_branch
      %141 = sbr.rel (%p138) target = $region32
    $region31: #{double_conv_pallas.5} parent=5 // pred_region
      %s142 = ssub.s32 %s9, 1
      %p143 = scmp.lt.s32.totalorder %s14, 1
      %s144 = scalar_select %p143, %s14, 1
      %s145 = smul.addr %s144, 2
      %s146 = smul.addr %s145, 8
      %s147 = scalar_lea.vmem %s0, %s146
      %p148 = pneg %p35
      %p149 = pneg %p32
      %p150 = pneg %p56
      %p151 = pneg %p53
      %p152 = pneg %p77
      %p153 = pneg %p74
      %p154 = pneg %p103
      %p155 = pneg %p100
      %p156 = scmp.lt.s32.totalorder %s14, 1
      %s157 = scalar_select %p156, %s14, 1
      %s158 = smul.addr %s157, 2
      %s159 = smul.addr %s158, 8
      %s160 = scalar_lea.vmem %s3, %s159
      %p161 = scmp.lt.s32.totalorder %s14, 1
      %s162 = scalar_select %p161, %s14, 1
      %s163 = smul.addr %s162, 2
      %s164 = smul.addr %s163, 8
      %s165 = scalar_lea.vmem %s0, %s164
      %p166 = scmp.lt.s32.totalorder %s14, 1
      %s167 = scalar_select %p166, %s14, 1
      %s168 = smul.addr %s167, 2
      %s169 = smul.addr %s168, 8
      %s170 = scalar_lea.vmem %s3, %s169
      %v171 = vld [vmem:[%s165] sm:$0xff]
      %v172 = vld [vmem:[%s165 + $0x8] sm:$0xff]
      %v173 = vld [vmem:[%s1] sm:$0xff]
      %175 = vset.pattern.permute.xlu0 0
      %176 = vperm.xlu0 %175, %v173
      %v177 = vpop.permute.xlu0 %176
      %v179 = vmul.f32 %v171, %v177
      %v180 = vmul.f32 %v172, %v177
      %v181 = vld [vmem:[%s2] sm:$0xff]
      %183 = vset.pattern.permute.xlu0 0
      %184 = vperm.xlu0 %183, %v181
      %v185 = vpop.permute.xlu0 %184
      %v187 = vadd.f32 %v179, %v185
      %v188 = vadd.f32 %v180, %v185
      %v189 = vmax.f32 %v187, 0.0
      %v190 = vmax.f32 %v188, 0.0
      %191 = vst [vmem:[%s170] sm:$0xff] %v189
      %192 = vst [vmem:[%s170 + $0x8] sm:$0xff] %v190
      %p193 = scmp.lt.s32.totalorder %s14, 1
      %s194 = scalar_select %p193, %s14, 1
      %s195 = smul.addr %s194, 2
      %s196 = smul.addr %s195, 8
      %s197 = scalar_lea.vmem %s3, %s196
      // Predicated region
      $region33: #{double_conv_pallas.5} parent=31 // pred_check
        %p198 = pneg %p100
      $region34: #{double_conv_pallas.5} parent=31 // pred_check_branch
        %200 = sbr.rel (%p198) target = $region36
      $region35: #{double_conv_pallas.5} parent=31 // pred_region
        _
      $region36: #{double_conv_pallas.5} parent=31 // pred_fallthru
        _
    $region32: #{double_conv_pallas.5} parent=5 // pred_fallthru
      _
    %p201 = scmp.le.s32.totalorder 2, %s9
    // Predicated region
    $region37: #{double_conv_pallas.5} parent=5 // pred_check
      %p202 = pneg %p201
    $region38: #{double_conv_pallas.5} parent=5 // pred_check_branch
      %204 = sbr.rel (%p202) target = $region40
    $region39: #{double_conv_pallas.5} parent=5 // pred_region
      %s205 = ssub.s32 %s9, 2
      // Predicated region
      $region41: #{double_conv_pallas.5} parent=39 // pred_check
        %p206 = pneg %p106
      $region42: #{double_conv_pallas.5} parent=39 // pred_check_branch
        %208 = sbr.rel (%p206) target = $region44
      $region43: #{double_conv_pallas.5} parent=39 // pred_region
        %p209 = scmp.lt.s32.totalorder %s15, 1
        %s210 = scalar_select %p209, %s15, 1
        %s211 = smul.addr %s210, 2
        %s212 = smul.addr %s211, 8
        %s213 = scalar_lea.vmem %s3, %s212
      $region44: #{double_conv_pallas.5} parent=39 // pred_fallthru
        _
    $region40: #{double_conv_pallas.5} parent=5 // pred_fallthru
      _
  $region6: #{double_conv_pallas.5} parent=0 // loop_footer
    %s13 = sadd.s32 1, %s9
  $region7: #{double_conv_pallas.5} parent=0 // loop_footer_branch
    %8 = sbr.rel target = $region3
  $region8: #{double_conv_pallas.5} parent=0 // loop_exit
    _

// kernel: double_conv_pallas.3
$region0: #{double_conv_pallas.3}
  #allocation0 [shape = 'u32[]', space=smem, size = 0x4, offset = 0x4, fixed_abs, tag = 'smem constant byte address 0x4 - core index']
  #allocation1 [shape = 'u32[144,128]{1,0:T(1,128)}', space=vmem, size = 0x12000, scoped, tag = 'internal scratch']
  %s0 = inlined_call_operand.vmem [shape: f32[2,8,256], index: 0, kind: input, shape index: {}]
  %s1 = inlined_call_operand.vmem [shape: f32[8,72], index: 1, kind: input, shape index: {}]
  %s2 = inlined_call_operand.vmem [shape: f32[8,1], index: 2, kind: input, shape index: {}]
  %s3 = inlined_call_operand.vmem [shape: f32[8,1], index: 3, kind: input, shape index: {}]
  %s4 = inlined_call_operand.vmem [shape: f32[8,1], index: 4, kind: input, shape index: {}]
  %s5 = inlined_call_operand.vmem [shape: f32[9,256], index: 5, kind: input, shape index: {}]
  %s6 = inlined_call_operand.vmem [shape: f32[2,8,256], index: 6, kind: output, shape index: {0}]
  %s7 = inlined_call_operand.vmem [shape: f32[2,8,1], index: 7, kind: output, shape index: {1}]
  %s8 = inlined_call_operand.vmem [shape: f32[2,8,1], index: 8, kind: output, shape index: {2}]
  %9 = xla_tuple %s6, %s7, %s8
  %s10 = sld [smem:[#allocation0]]
  $region73: #{double_conv_pallas.3} parent=0
    _
  %s12 = ssub.s32 1, %s10
  %s13 = scalar_select 0, %s12, %s10
  loop: start=0, step=1, limit=4
  $region2: #{double_conv_pallas.3} parent=0 // loop_pre_header
    _
  $region3: #{double_conv_pallas.3} parent=0 // loop_header
    %s15 = sphi 0, %s19
    %p16 = scmp.ge.s32.totalorder %s15, 4
    %s25 = sphi 0, %s27
    %s28 = sphi 0, %s25
    %s29 = sphi 0, %s28
    %s45 = sphi 0, %s29
    %s49 = sphi 0, %s49
    %s51 = sphi 0, %s49
    %s52 = sphi 0, %s51
    %s66 = sphi 0, %s52
    %s70 = sphi 0, %s70
    %s72 = sphi 0, %s70
    %s73 = sphi 0, %s72
    %s87 = sphi 0, %s73
    %s91 = sphi 0, %s91
    %s93 = sphi 0, %s91
    %s94 = sphi 0, %s93
    %s108 = sphi 0, %s94
    %s112 = sphi 0, %s112
    %s114 = sphi 0, %s112
    %s115 = sphi 0, %s114
    %s129 = sphi 0, %s115
    %s133 = sphi 0, %s133
    %s135 = sphi 0, %s133
    %s136 = sphi 0, %s135
    %s150 = sphi 0, %s136
    %s156 = sphi 0, %s158
    %s159 = sphi 0, %s156
    %s160 = sphi 0, %s159
    %s176 = sphi 0, %s160
    %s182 = sphi 0, %s184
    %s185 = sphi 0, %s182
    %s186 = sphi 0, %s185
    %s202 = sphi 0, %s186
    %s208 = sphi 0, %s210
    %s211 = sphi 0, %s208
    %s212 = sphi 0, %s211
    %s228 = sphi 0, %s212
  $region4: #{double_conv_pallas.3} parent=0 // loop_header_branch
    %18 = sbr.rel (%p16) target = $region8
  $region5: #{double_conv_pallas.3} parent=0 // loop_body
    %s20 = ssub.s32 %s15, 1
    %s21 = ssub.s32 %s15, 2
    %s22 = sadd.s32 %s15, 1
    %s23 = ssub.s32 %s15, %s22
    %p24 = scmp.eq.s32.totalorder %s23, 0
    %s26 = sadd.s32 %s25, 1
    %s27 = scalar_select %p24, %s25, %s26
    %p30 = pneg %p24
    %p31 = scmp.eq.s32.totalorder %s15, 1
    %p32 = por %p30, %p31
    %p33 = scmp.ne.s32.totalorder %s25, %s28
    %p34 = scmp.eq.s32.totalorder %s15, 0
    %p35 = por %p33, %p34
    %p36 = scmp.ne.s32.totalorder %s25, %s28
    %p37 = scmp.eq.s32.totalorder %s20, 1
    %p38 = por %p36, %p37
    %p39 = scmp.ne.s32.totalorder %s28, %s29
    %p40 = scmp.eq.s32.totalorder %s20, 0
    %p41 = por %p39, %p40
    %p42 = scmp.ne.s32.totalorder %s28, %s29
    %p43 = scmp.eq.s32.totalorder %s21, 1
    %p44 = por %p42, %p43
    %p46 = scmp.ne.s32.totalorder %s29, %s45
    %p47 = scmp.eq.s32.totalorder %s21, 0
    %p48 = por %p46, %p47
    %s50 = sadd.s32 %s49, 1
    %p53 = scmp.eq.s32.totalorder %s15, 1
    %p54 = scmp.ne.s32.totalorder %s49, %s51
    %p55 = scmp.eq.s32.totalorder %s15, 0
    %p56 = por %p54, %p55
    %p57 = scmp.ne.s32.totalorder %s49, %s51
    %p58 = scmp.eq.s32.totalorder %s20, 1
    %p59 = por %p57, %p58
    %p60 = scmp.ne.s32.totalorder %s51, %s52
    %p61 = scmp.eq.s32.totalorder %s20, 0
    %p62 = por %p60, %p61
    %p63 = scmp.ne.s32.totalorder %s51, %s52
    %p64 = scmp.eq.s32.totalorder %s21, 1
    %p65 = por %p63, %p64
    %p67 = scmp.ne.s32.totalorder %s52, %s66
    %p68 = scmp.eq.s32.totalorder %s21, 0
    %p69 = por %p67, %p68
    %s71 = sadd.s32 %s70, 1
    %p74 = scmp.eq.s32.totalorder %s15, 1
    %p75 = scmp.ne.s32.totalorder %s70, %s72
    %p76 = scmp.eq.s32.totalorder %s15, 0
    %p77 = por %p75, %p76
    %p78 = scmp.ne.s32.totalorder %s70, %s72
    %p79 = scmp.eq.s32.totalorder %s20, 1
    %p80 = por %p78, %p79
    %p81 = scmp.ne.s32.totalorder %s72, %s73
    %p82 = scmp.eq.s32.totalorder %s20, 0
    %p83 = por %p81, %p82
    %p84 = scmp.ne.s32.totalorder %s72, %s73
    %p85 = scmp.eq.s32.totalorder %s21, 1
    %p86 = por %p84, %p85
    %p88 = scmp.ne.s32.totalorder %s73, %s87
    %p89 = scmp.eq.s32.totalorder %s21, 0
    %p90 = por %p88, %p89
    %s92 = sadd.s32 %s91, 1
    %p95 = scmp.eq.s32.totalorder %s15, 1
    %p96 = scmp.ne.s32.totalorder %s91, %s93
    %p97 = scmp.eq.s32.totalorder %s15, 0
    %p98 = por %p96, %p97
    %p99 = scmp.ne.s32.totalorder %s91, %s93
    %p100 = scmp.eq.s32.totalorder %s20, 1
    %p101 = por %p99, %p100
    %p102 = scmp.ne.s32.totalorder %s93, %s94
    %p103 = scmp.eq.s32.totalorder %s20, 0
    %p104 = por %p102, %p103
    %p105 = scmp.ne.s32.totalorder %s93, %s94
    %p106 = scmp.eq.s32.totalorder %s21, 1
    %p107 = por %p105, %p106
    %p109 = scmp.ne.s32.totalorder %s94, %s108
    %p110 = scmp.eq.s32.totalorder %s21, 0
    %p111 = por %p109, %p110
    %s113 = sadd.s32 %s112, 1
    %p116 = scmp.eq.s32.totalorder %s15, 1
    %p117 = scmp.ne.s32.totalorder %s112, %s114
    %p118 = scmp.eq.s32.totalorder %s15, 0
    %p119 = por %p117, %p118
    %p120 = scmp.ne.s32.totalorder %s112, %s114
    %p121 = scmp.eq.s32.totalorder %s20, 1
    %p122 = por %p120, %p121
    %p123 = scmp.ne.s32.totalorder %s114, %s115
    %p124 = scmp.eq.s32.totalorder %s20, 0
    %p125 = por %p123, %p124
    %p126 = scmp.ne.s32.totalorder %s114, %s115
    %p127 = scmp.eq.s32.totalorder %s21, 1
    %p128 = por %p126, %p127
    %p130 = scmp.ne.s32.totalorder %s115, %s129
    %p131 = scmp.eq.s32.totalorder %s21, 0
    %p132 = por %p130, %p131
    %s134 = sadd.s32 %s133, 1
    %p137 = scmp.eq.s32.totalorder %s15, 1
    %p138 = scmp.ne.s32.totalorder %s133, %s135
    %p139 = scmp.eq.s32.totalorder %s15, 0
    %p140 = por %p138, %p139
    %p141 = scmp.ne.s32.totalorder %s133, %s135
    %p142 = scmp.eq.s32.totalorder %s20, 1
    %p143 = por %p141, %p142
    %p144 = scmp.ne.s32.totalorder %s135, %s136
    %p145 = scmp.eq.s32.totalorder %s20, 0
    %p146 = por %p144, %p145
    %p147 = scmp.ne.s32.totalorder %s135, %s136
    %p148 = scmp.eq.s32.totalorder %s21, 1
    %p149 = por %p147, %p148
    %p151 = scmp.ne.s32.totalorder %s136, %s150
    %p152 = scmp.eq.s32.totalorder %s21, 0
    %p153 = por %p151, %p152
    %s154 = ssub.s32 %s15, %s22
    %p155 = scmp.eq.s32.totalorder %s154, 0
    %s157 = sadd.s32 %s156, 1
    %s158 = scalar_select %p155, %s156, %s157
    %p161 = pneg %p155
    %p162 = scmp.eq.s32.totalorder %s15, 1
    %p163 = por %p161, %p162
    %p164 = scmp.ne.s32.totalorder %s156, %s159
    %p165 = scmp.eq.s32.totalorder %s15, 0
    %p166 = por %p164, %p165
    %p167 = scmp.ne.s32.totalorder %s156, %s159
    %p168 = scmp.eq.s32.totalorder %s20, 1
    %p169 = por %p167, %p168
    %p170 = scmp.ne.s32.totalorder %s159, %s160
    %p171 = scmp.eq.s32.totalorder %s20, 0
    %p172 = por %p170, %p171
    %p173 = scmp.ne.s32.totalorder %s159, %s160
    %p174 = scmp.eq.s32.totalorder %s21, 1
    %p175 = por %p173, %p174
    %p177 = scmp.ne.s32.totalorder %s160, %s176
    %p178 = scmp.eq.s32.totalorder %s21, 0
    %p179 = por %p177, %p178
    %s180 = ssub.s32 %s15, %s22
    %p181 = scmp.eq.s32.totalorder %s180, 0
    %s183 = sadd.s32 %s182, 1
    %s184 = scalar_select %p181, %s182, %s183
    %p187 = pneg %p181
    %p188 = scmp.eq.s32.totalorder %s15, 1
    %p189 = por %p187, %p188
    %p190 = scmp.ne.s32.totalorder %s182, %s185
    %p191 = scmp.eq.s32.totalorder %s15, 0
    %p192 = por %p190, %p191
    %p193 = scmp.ne.s32.totalorder %s182, %s185
    %p194 = scmp.eq.s32.totalorder %s20, 1
    %p195 = por %p193, %p194
    %p196 = scmp.ne.s32.totalorder %s185, %s186
    %p197 = scmp.eq.s32.totalorder %s20, 0
    %p198 = por %p196, %p197
    %p199 = scmp.ne.s32.totalorder %s185, %s186
    %p200 = scmp.eq.s32.totalorder %s21, 1
    %p201 = por %p199, %p200
    %p203 = scmp.ne.s32.totalorder %s186, %s202
    %p204 = scmp.eq.s32.totalorder %s21, 0
    %p205 = por %p203, %p204
    %s206 = ssub.s32 %s15, %s22
    %p207 = scmp.eq.s32.totalorder %s206, 0
    %s209 = sadd.s32 %s208, 1
    %s210 = scalar_select %p207, %s208, %s209
    %p213 = pneg %p207
    %p214 = scmp.eq.s32.totalorder %s15, 1
    %p215 = por %p213, %p214
    %p216 = scmp.ne.s32.totalorder %s208, %s211
    %p217 = scmp.eq.s32.totalorder %s15, 0
    %p218 = por %p216, %p217
    %p219 = scmp.ne.s32.totalorder %s208, %s211
    %p220 = scmp.eq.s32.totalorder %s20, 1
    %p221 = por %p219, %p220
    %p222 = scmp.ne.s32.totalorder %s211, %s212
    %p223 = scmp.eq.s32.totalorder %s20, 0
    %p224 = por %p222, %p223
    %p225 = scmp.ne.s32.totalorder %s211, %s212
    %p226 = scmp.eq.s32.totalorder %s21, 1
    %p227 = por %p225, %p226
    %p229 = scmp.ne.s32.totalorder %s212, %s228
    %p230 = scmp.eq.s32.totalorder %s21, 0
    %p231 = por %p229, %p230
    %p232 = scmp.le.s32.totalorder 1, %s15
    %p233 = scmp.lt.s32.totalorder %s15, 3
    %p234 = pnand %p232, %p233
    %p235 = pneg %p234
    // Predicated region
    $region9: #{double_conv_pallas.3} parent=5 // pred_check
      _
    $region10: #{double_conv_pallas.3} parent=5 // pred_check_branch
      %237 = sbr.rel (%p234) target = $region12
    $region11: #{double_conv_pallas.3} parent=5 // pred_region
      %s238 = ssub.s32 %s15, 1
      // Predicated region
      $region13: #{double_conv_pallas.3} parent=11 // pred_check
        %p239 = pneg %p62
      $region14: #{double_conv_pallas.3} parent=11 // pred_check_branch
        %241 = sbr.rel (%p239) target = $region16
      $region15: #{double_conv_pallas.3} parent=11 // pred_region
        _
      $region16: #{double_conv_pallas.3} parent=11 // pred_fallthru
        _
      // Predicated region
      $region17: #{double_conv_pallas.3} parent=11 // pred_check
        %p242 = pneg %p83
      $region18: #{double_conv_pallas.3} parent=11 // pred_check_branch
        %244 = sbr.rel (%p242) target = $region20
      $region19: #{double_conv_pallas.3} parent=11 // pred_region
        _
      $region20: #{double_conv_pallas.3} parent=11 // pred_fallthru
        _
      // Predicated region
      $region21: #{double_conv_pallas.3} parent=11 // pred_check
        %p245 = pneg %p104
      $region22: #{double_conv_pallas.3} parent=11 // pred_check_branch
        %247 = sbr.rel (%p245) target = $region24
      $region23: #{double_conv_pallas.3} parent=11 // pred_region
        _
      $region24: #{double_conv_pallas.3} parent=11 // pred_fallthru
        _
      // Predicated region
      $region25: #{double_conv_pallas.3} parent=11 // pred_check
        %p248 = pneg %p125
      $region26: #{double_conv_pallas.3} parent=11 // pred_check_branch
        %250 = sbr.rel (%p248) target = $region28
      $region27: #{double_conv_pallas.3} parent=11 // pred_region
        _
      $region28: #{double_conv_pallas.3} parent=11 // pred_fallthru
        _
      // Predicated region
      $region29: #{double_conv_pallas.3} parent=11 // pred_check
        %p251 = pneg %p146
      $region30: #{double_conv_pallas.3} parent=11 // pred_check_branch
        %253 = sbr.rel (%p251) target = $region32
      $region31: #{double_conv_pallas.3} parent=11 // pred_region
        _
      $region32: #{double_conv_pallas.3} parent=11 // pred_fallthru
        _
    $region12: #{double_conv_pallas.3} parent=5 // pred_fallthru
      _
    %p254 = scmp.lt.s32.totalorder %s15, 2
    // Predicated region
    $region33: #{double_conv_pallas.3} parent=5 // pred_check
      %p255 = pneg %p254
    $region34: #{double_conv_pallas.3} parent=5 // pred_check_branch
      %257 = sbr.rel (%p255) target = $region36
    $region35: #{double_conv_pallas.3} parent=5 // pred_region
      // Predicated region
      $region37: #{double_conv_pallas.3} parent=35 // pred_check
        %p258 = pneg %p35
      $region38: #{double_conv_pallas.3} parent=35 // pred_check_branch
        %260 = sbr.rel (%p258) target = $region40
      $region39: #{double_conv_pallas.3} parent=35 // pred_region
        %p261 = scmp.lt.s32.totalorder %s15, 1
        %s262 = scalar_select %p261, %s15, 1
        %s263 = smul.addr %s262, 2
        %s264 = smul.addr %s263, 8
        %s265 = scalar_lea.vmem %s0, %s264
      $region40: #{double_conv_pallas.3} parent=35 // pred_fallthru
        _
    $region36: #{double_conv_pallas.3} parent=5 // pred_fallthru
      _
    %p266 = scmp.le.s32.totalorder 1, %s15
    %p267 = scmp.lt.s32.totalorder %s15, 3
    %p268 = pnand %p266, %p267
    %p269 = pneg %p268
    // Predicated region
    $region41: #{double_conv_pallas.3} parent=5 // pred_check
      _
    $region42: #{double_conv_pallas.3} parent=5 // pred_check_branch
      %271 = sbr.rel (%p268) target = $region44
    $region43: #{double_conv_pallas.3} parent=5 // pred_region
      %s272 = ssub.s32 %s15, 1
      %p273 = scmp.lt.s32.totalorder %s20, 1
      %s274 = scalar_select %p273, %s20, 1
      %s275 = smul.addr %s274, 2
      %s276 = smul.addr %s275, 8
      %s277 = scalar_lea.vmem %s0, %s276
      %p278 = pneg %p41
      %p279 = pneg %p38
      %p280 = pneg %p62
      %p281 = pneg %p59
      %p282 = pneg %p83
      %p283 = pneg %p80
      %p284 = pneg %p104
      %p285 = pneg %p101
      %p286 = pneg %p125
      %p287 = pneg %p122
      %p288 = pneg %p146
      %p289 = pneg %p143
      %p290 = pneg %p172
      %p291 = pneg %p169
      %p292 = scmp.lt.s32.totalorder %s20, 1
      %s293 = scalar_select %p292, %s20, 1
      %s294 = smul.addr %s293, 2
      %s295 = smul.addr %s294, 8
      %s296 = scalar_lea.vmem %s6, %s295
      %p297 = pneg %p198
      %p298 = pneg %p195
      %p299 = scmp.lt.s32.totalorder %s20, 1
      %s300 = scalar_select %p299, %s20, 1
      %s301 = smul.addr %s300, 8
      %s302 = scalar_lea.vmem %s7, %s301
      %p303 = pneg %p224
      %p304 = pneg %p221
      %p305 = scmp.lt.s32.totalorder %s20, 1
      %s306 = scalar_select %p305, %s20, 1
      %s307 = smul.addr %s306, 8
      %s308 = scalar_lea.vmem %s8, %s307
      %p309 = scmp.lt.s32.totalorder %s20, 1
      %s310 = scalar_select %p309, %s20, 1
      %s311 = smul.addr %s310, 2
      %s312 = smul.addr %s311, 8
      %s313 = scalar_lea.vmem %s0, %s312
      %p314 = scmp.lt.s32.totalorder %s20, 1
      %s315 = scalar_select %p314, %s20, 1
      %s316 = smul.addr %s315, 2
      %s317 = smul.addr %s316, 8
      %s318 = scalar_lea.vmem %s6, %s317
      %p319 = scmp.lt.s32.totalorder %s20, 1
      %s320 = scalar_select %p319, %s20, 1
      %s321 = smul.addr %s320, 8
      %s322 = scalar_lea.vmem %s7, %s321
      %p323 = scmp.lt.s32.totalorder %s20, 1
      %s324 = scalar_select %p323, %s20, 1
      %s325 = smul.addr %s324, 8
      %s326 = scalar_lea.vmem %s8, %s325
      %v327 = vld [vmem:[%s313] sm:$0xff]
      %v328 = vld [vmem:[%s313 + $0x8] sm:$0xff]
      %v329 = vld [vmem:[%s5] ss:$8 sm:$0x3]
      %v331 = vlaneseq
      %v332 = vshrl.u32 %v331, 7
      %v333 = vsub.s32 0, %v332
      %v334 = vrot.slane %v329, %v333
      %v335 = vlaneseq
      %v336 = vshrl.u32 %v335, 7
      %v337 = vsub.s32 1, %v336
      %v338 = vrot.slane %v329, %v337
      %339 = vrot.lane.b32.xlu0 %v334, 111
      %v340 = vpop.permute.xlu0 %339
      %341 = vrot.lane.b32.xlu0 %v338, 111
      %v342 = vpop.permute.xlu0 %341
      %vm343 = vcmask 908288
      %v344 = vsel %vm343, %v340, %v342
      %v348 = vmul.f32 %v340, 0.0
      %v349 = vmul.f32 %v327, %v344
      %v350 = vmul.f32 %v328, %v342
      %s351 = scalar_lea.vmem %s5, 1
      %v352 = vld [vmem:[%s351] ss:$8 sm:$0x3]
      %v354 = vlaneseq
      %v355 = vshrl.u32 %v354, 7
      %v356 = vsub.s32 0, %v355
      %v357 = vrot.slane %v352, %v356
      %v358 = vlaneseq
      %v359 = vshrl.u32 %v358, 7
      %v360 = vsub.s32 1, %v359
      %v361 = vrot.slane %v352, %v360
      %362 = vrot.lane.b32.xlu0 %v357, 112
      %v363 = vpop.permute.xlu0 %362
      %364 = vrot.lane.b32.xlu0 %v361, 112
      %v365 = vpop.permute.xlu0 %364
      %vm366 = vcmask 916480
      %v367 = vsel %vm366, %v363, %v365
      %v371 = vmul.f32 %v363, 0.0
      %v372 = vmul.f32 %v327, %v367
      %v373 = vmul.f32 %v328, %v365
      %s374 = scalar_lea.vmem %s5, 2
      %v375 = vld [vmem:[%s374] ss:$8 sm:$0x3]
      %v377 = vlaneseq
      %v378 = vshrl.u32 %v377, 7
      %v379 = vsub.s32 0, %v378
      %v380 = vrot.slane %v375, %v379
      %v381 = vlaneseq
      %v382 = vshrl.u32 %v381, 7
      %v383 = vsub.s32 1, %v382
      %v384 = vrot.slane %v375, %v383
      %385 = vrot.lane.b32.xlu0 %v380, 113
      %v386 = vpop.permute.xlu0 %385
      %387 = vrot.lane.b32.xlu0 %v384, 113
      %v388 = vpop.permute.xlu0 %387
      %vm389 = vcmask 924672
      %v390 = vsel %vm389, %v386, %v388
      %v394 = vmul.f32 %v386, 0.0
      %v395 = vmul.f32 %v327, %v390
      %v396 = vmul.f32 %v328, %v388
      %s397 = scalar_lea.vmem %s5, 3
      %v398 = vld [vmem:[%s397] ss:$8 sm:$0x3]
      %v400 = vlaneseq
      %v401 = vshrl.u32 %v400, 7
      %v402 = vsub.s32 0, %v401
      %v403 = vrot.slane %v398, %v402
      %v404 = vlaneseq
      %v405 = vshrl.u32 %v404, 7
      %v406 = vsub.s32 1, %v405
      %v407 = vrot.slane %v398, %v406
      %408 = vrot.lane.b32.xlu0 %v403, 127
      %v409 = vpop.permute.xlu0 %408
      %410 = vrot.lane.b32.xlu0 %v407, 127
      %v411 = vpop.permute.xlu0 %410
      %vm412 = vcmask 1039360
      %v413 = vsel %vm412, %v409, %v411
      %v417 = vmul.f32 %v409, 0.0
      %v418 = vmul.f32 %v327, %v413
      %v419 = vmul.f32 %v328, %v411
      %s420 = scalar_lea.vmem %s5, 5
      %v421 = vld [vmem:[%s420] ss:$8 sm:$0x3]
      %v423 = vlaneseq
      %v424 = vshrl.u32 %v423, 7
      %v425 = vsub.s32 0, %v424
      %v426 = vrot.slane %v421, %v425
      %v427 = vlaneseq
      %v428 = vshrl.u32 %v427, 7
      %v429 = vsub.s32 1, %v428
      %v430 = vrot.slane %v421, %v429
      %431 = vrot.lane.b32.xlu0 %v426, 1
      %v432 = vpop.permute.xlu0 %431
      %433 = vrot.lane.b32.xlu0 %v430, 1
      %v434 = vpop.permute.xlu0 %433
      %vm435 = vcmask 7168
      %v436 = vsel %vm435, %v432, %v434
      %v440 = vmul.f32 %v327, %v432
      %v441 = vmul.f32 %v328, %v436
      %v442 = vmul.f32 %v434, 0.0
      %s443 = scalar_lea.vmem %s5, 6
      %v444 = vld [vmem:[%s443] ss:$8 sm:$0x3]
      %v446 = vlaneseq
      %v447 = vshrl.u32 %v446, 7
      %v448 = vsub.s32 0, %v447
      %v449 = vrot.slane %v444, %v448
      %v450 = vlaneseq
      %v451 = vshrl.u32 %v450, 7
      %v452 = vsub.s32 1, %v451
      %v453 = vrot.slane %v444, %v452
      %454 = vrot.lane.b32.xlu0 %v449, 15
      %v455 = vpop.permute.xlu0 %454
      %456 = vrot.lane.b32.xlu0 %v453, 15
      %v457 = vpop.permute.xlu0 %456
      %vm458 = vcmask 121856
      %v459 = vsel %vm458, %v455, %v457
      %v463 = vmul.f32 %v327, %v455
      %v464 = vmul.f32 %v328, %v459
      %v465 = vmul.f32 %v457, 0.0
      %s466 = scalar_lea.vmem %s5, 7
      %v467 = vld [vmem:[%s466] ss:$8 sm:$0x3]
      %v469 = vlaneseq
      %v470 = vshrl.u32 %v469, 7
      %v471 = vsub.s32 0, %v470
      %v472 = vrot.slane %v467, %v471
      %v473 = vlaneseq
      %v474 = vshrl.u32 %v473, 7
      %v475 = vsub.s32 1, %v474
      %v476 = vrot.slane %v467, %v475
      %477 = vrot.lane.b32.xlu0 %v472, 16
      %v478 = vpop.permute.xlu0 %477
      %479 = vrot.lane.b32.xlu0 %v476, 16
      %v480 = vpop.permute.xlu0 %479
      %vm481 = vcmask 130048
      %v482 = vsel %vm481, %v478, %v480
      %v486 = vmul.f32 %v327, %v478
      %v487 = vmul.f32 %v328, %v482
      %v488 = vmul.f32 %v480, 0.0
      %s489 = scalar_lea.vmem %s5, 16
      %v490 = vld [vmem:[%s489] ss:$8 sm:$0x3]
      %v492 = vlaneseq
      %v493 = vshrl.u32 %v492, 7
      %v494 = vsub.s32 0, %v493
      %v495 = vrot.slane %v490, %v494
      %v496 = vlaneseq
      %v497 = vshrl.u32 %v496, 7
      %v498 = vsub.s32 1, %v497
      %v499 = vrot.slane %v490, %v498
      %500 = vrot.lane.b32.xlu0 %v495, 17
      %v501 = vpop.permute.xlu0 %500
      %502 = vrot.lane.b32.xlu0 %v499, 17
      %v503 = vpop.permute.xlu0 %502
      %vm504 = vcmask 138240
      %v505 = vsel %vm504, %v501, %v503
      %v509 = vmul.f32 %v327, %v501
      %v510 = vmul.f32 %v328, %v505
      %v511 = vmul.f32 %v503, 0.0
      %515 = vrot.lane.b32.xlu0 %v371, 127
      %v516 = vpop.permute.xlu0 %515
      %517 = vrot.lane.b32.xlu0 %v372, 127
      %v518 = vpop.permute.xlu0 %517
      %519 = vrot.lane.b32.xlu0 %v373, 127
      %v520 = vpop.permute.xlu0 %519
      %v521 = vsel %vm412, %v516, %v518
      %v522 = vsel %vm412, %v518, %v520
      %526 = vrot.lane.b32.xlu0 %v394, 126
      %v527 = vpop.permute.xlu0 %526
      %528 = vrot.lane.b32.xlu0 %v395, 126
      %v529 = vpop.permute.xlu0 %528
      %530 = vrot.lane.b32.xlu0 %v396, 126
      %v531 = vpop.permute.xlu0 %530
      %vm532 = vcmask 1031168
      %v533 = vsel %vm532, %v527, %v529
      %v534 = vsel %vm532, %v529, %v531
      %538 = vrot.lane.b32.xlu0 %v417, 112
      %v539 = vpop.permute.xlu0 %538
      %540 = vrot.lane.b32.xlu0 %v418, 112
      %v541 = vpop.permute.xlu0 %540
      %542 = vrot.lane.b32.xlu0 %v419, 112
      %v543 = vpop.permute.xlu0 %542
      %v544 = vsel %vm366, %v539, %v541
      %v545 = vsel %vm366, %v541, %v543
      %548 = vrot.lane.b32.xlu0 %v327, 111
      %v549 = vpop.permute.xlu0 %548
      %550 = vrot.lane.b32.xlu0 %v328, 111
      %v551 = vpop.permute.xlu0 %550
      %v552 = vsel %vm343, %v549, %v551
      %556 = vrot.lane.b32.xlu0 %v440, 110
      %v557 = vpop.permute.xlu0 %556
      %558 = vrot.lane.b32.xlu0 %v441, 110
      %v559 = vpop.permute.xlu0 %558
      %560 = vrot.lane.b32.xlu0 %v442, 110
      %v561 = vpop.permute.xlu0 %560
      %vm562 = vcmask 900096
      %v563 = vsel %vm562, %v557, %v559
      %v564 = vsel %vm562, %v559, %v561
      %568 = vrot.lane.b32.xlu0 %v463, 96
      %v569 = vpop.permute.xlu0 %568
      %570 = vrot.lane.b32.xlu0 %v464, 96
      %v571 = vpop.permute.xlu0 %570
      %572 = vrot.lane.b32.xlu0 %v465, 96
      %v573 = vpop.permute.xlu0 %572
      %vm574 = vcmask 785408
      %v575 = vsel %vm574, %v569, %v571
      %v576 = vsel %vm574, %v571, %v573
      %580 = vrot.lane.b32.xlu0 %v486, 95
      %v581 = vpop.permute.xlu0 %580
      %582 = vrot.lane.b32.xlu0 %v487, 95
      %v583 = vpop.permute.xlu0 %582
      %584 = vrot.lane.b32.xlu0 %v488, 95
      %v585 = vpop.permute.xlu0 %584
      %vm586 = vcmask 777216
      %v587 = vsel %vm586, %v581, %v583
      %v588 = vsel %vm586, %v583, %v585
      %592 = vrot.lane.b32.xlu0 %v509, 94
      %v593 = vpop.permute.xlu0 %592
      %594 = vrot.lane.b32.xlu0 %v510, 94
      %v595 = vpop.permute.xlu0 %594
      %596 = vrot.lane.b32.xlu0 %v511, 94
      %v597 = vpop.permute.xlu0 %596
      %vm598 = vcmask 769024
      %v599 = vsel %vm598, %v593, %v595
      %v600 = vsel %vm598, %v595, %v597
      %v601 = vld [vmem:[%s1] sm:$0xff]
      %v602 = vld [vmem:[%s2] sm:$0xff]
      %604 = vset.pattern.permute.xlu0 0
      %605 = vperm.xlu0 %604, %v602
      %v606 = vpop.permute.xlu0 %605
      %611 = vrot.lane.b32.xlu0 %v348, 17
      %v612 = vpop.permute.xlu0 %611
      %613 = vrot.lane.b32.xlu0 %v349, 17
      %v614 = vpop.permute.xlu0 %613
      %615 = vrot.lane.b32.xlu0 %v350, 17
      %v616 = vpop.permute.xlu0 %615
      %617 = vrot.lane.b32.xlu0 %v521, 17
      %v618 = vpop.permute.xlu0 %617
      %619 = vrot.lane.b32.xlu0 %v522, 17
      %v620 = vpop.permute.xlu0 %619
      %621 = vrot.lane.b32.xlu0 %v520, 17
      %v622 = vpop.permute.xlu0 %621
      %623 = vrot.lane.b32.xlu0 %v533, 17
      %v624 = vpop.permute.xlu0 %623
      %625 = vrot.lane.b32.xlu0 %v534, 17
      %v626 = vpop.permute.xlu0 %625
      %627 = vrot.lane.b32.xlu0 %v531, 17
      %v628 = vpop.permute.xlu0 %627
      %629 = vrot.lane.b32.xlu0 %v544, 17
      %v630 = vpop.permute.xlu0 %629
      %631 = vrot.lane.b32.xlu0 %v545, 17
      %v632 = vpop.permute.xlu0 %631
      %633 = vrot.lane.b32.xlu0 %v543, 17
      %v634 = vpop.permute.xlu0 %633
      %635 = vrot.lane.b32.xlu0 %v549, 17
      %v636 = vpop.permute.xlu0 %635
      %637 = vrot.lane.b32.xlu0 %v552, 17
      %v638 = vpop.permute.xlu0 %637
      %639 = vrot.lane.b32.xlu0 %v551, 17
      %v640 = vpop.permute.xlu0 %639
      %641 = vrot.lane.b32.xlu0 %v557, 17
      %v642 = vpop.permute.xlu0 %641
      %643 = vrot.lane.b32.xlu0 %v563, 17
      %v644 = vpop.permute.xlu0 %643
      %645 = vrot.lane.b32.xlu0 %v564, 17
      %v646 = vpop.permute.xlu0 %645
      %647 = vrot.lane.b32.xlu0 %v569, 17
      %v648 = vpop.permute.xlu0 %647
      %649 = vrot.lane.b32.xlu0 %v575, 17
      %v650 = vpop.permute.xlu0 %649
      %651 = vrot.lane.b32.xlu0 %v576, 17
      %v652 = vpop.permute.xlu0 %651
      %653 = vrot.lane.b32.xlu0 %v581, 17
      %v654 = vpop.permute.xlu0 %653
      %655 = vrot.lane.b32.xlu0 %v587, 17
      %v656 = vpop.permute.xlu0 %655
      %657 = vrot.lane.b32.xlu0 %v588, 17
      %v658 = vpop.permute.xlu0 %657
      %659 = vrot.lane.b32.xlu0 %v593, 17
      %v660 = vpop.permute.xlu0 %659
      %661 = vrot.lane.b32.xlu0 %v599, 17
      %v662 = vpop.permute.xlu0 %661
      %663 = vrot.lane.b32.xlu0 %v600, 17
      %v664 = vpop.permute.xlu0 %663
      %v665 = vsel %vm504, %v612, %v614
      %v666 = vsel %vm504, %v614, %v616
      %v667 = vsel %vm504, %v618, %v620
      %v668 = vsel %vm504, %v620, %v622
      %v669 = vsel %vm504, %v624, %v626
      %v670 = vsel %vm504, %v626, %v628
      %v671 = vsel %vm504, %v630, %v632
      %v672 = vsel %vm504, %v632, %v634
      %v673 = vsel %vm504, %v636, %v638
      %v674 = vsel %vm504, %v638, %v640
      %v675 = vsel %vm504, %v642, %v644
      %v676 = vsel %vm504, %v644, %v646
      %v677 = vsel %vm504, %v648, %v650
      %v678 = vsel %vm504, %v650, %v652
      %v679 = vsel %vm504, %v654, %v656
      %v680 = vsel %vm504, %v656, %v658
      %v681 = vsel %vm504, %v660, %v662
      %v682 = vsel %vm504, %v662, %v664
      %vm701 = vcmask 588800
      %v703 = vsel %vm701, %v601, 0
      %705 = vmatprep.subr.mxu0 0.0
      %706 = vmatpush1.msra.mxu0 0.0
      %707 = vmatprep.subr.mxu0 0.0
      %708 = vmatpush1.msra.mxu0 0.0
      %709 = vmatprep.subr.mxu0 0.0
      %710 = vmatpush1.msra.mxu0 0.0
      %711 = vmatprep.subr.mxu0 0.0
      %712 = vmatpush1.msra.mxu0 0.0
      %713 = vmatprep.subr.mxu0 0.0
      %714 = vmatpush1.msra.mxu0 0.0
      %715 = vmatprep.subr.mxu0 0.0
      %716 = vmatpush1.msra.mxu0 0.0
      %717 = vmatprep.subr.mxu0 0.0
      %718 = vmatpush1.msra.mxu0 0.0
      %719 = vmatprep.subr.mxu0 %v682
      %720 = vmatpush1.msra.mxu0 %v681
      %721 = vmatprep.subr.mxu0 %v680
      %722 = vmatpush1.msra.mxu0 %v679
      %723 = vmatprep.subr.mxu0 %v678
      %724 = vmatpush1.msra.mxu0 %v677
      %725 = vmatprep.subr.mxu0 %v676
      %726 = vmatpush1.msra.mxu0 %v675
      %727 = vmatprep.subr.mxu0 %v674
      %728 = vmatpush1.msra.mxu0 %v673
      %729 = vmatprep.subr.mxu0 %v672
      %730 = vmatpush1.msra.mxu0 %v671
      %731 = vmatprep.subr.mxu0 %v670
      %732 = vmatpush1.msra.mxu0 %v669
      %733 = vmatprep.subr.mxu0 %v668
      %734 = vmatpush1.msra.mxu0 %v667
      %735 = vmatprep.subr.mxu0 %v666
      %736 = vmatpush1.msra.mxu0 %v665
      %737 = vmatprep.subr.mxu0 0.0
      %738 = vmatpush2.msra.mxu0 0.0
      %739 = vmatprep.subr.mxu0 0.0
      %740 = vmatpush2.msra.mxu0 0.0
      %741 = vmatprep.subr.mxu0 0.0
      %742 = vmatpush2.msra.mxu0 0.0
      %743 = vmatprep.subr.mxu0 0.0
      %744 = vmatpush2.msra.mxu0 0.0
      %745 = vmatprep.subr.mxu0 0.0
      %746 = vmatpush2.msra.mxu0 0.0
      %747 = vmatprep.subr.mxu0 0.0
      %748 = vmatpush2.msra.mxu0 0.0
      %749 = vmatprep.subr.mxu0 0.0
      %750 = vmatpush2.msra.mxu0 0.0
      %751 = vmatprep.subr.mxu0 0.0
      %752 = vmatpush2.msra.mxu0 0.0
      %753 = vmatprep.subr.mxu0 0.0
      %754 = vmatpush2.msra.mxu0 0.0
      %755 = vmatprep.subr.mxu0 0.0
      %756 = vmatpush2.msra.mxu0 0.0
      %757 = vmatprep.subr.mxu0 0.0
      %758 = vmatpush2.msra.mxu0 0.0
      %759 = vmatprep.subr.mxu0 0.0
      %760 = vmatpush2.msra.mxu0 0.0
      %761 = vmatprep.subr.mxu0 0.0
      %762 = vmatpush2.msra.mxu0 0.0
      %763 = vmatprep.subr.mxu0 0.0
      %764 = vmatpush2.msra.mxu0 0.0
      %765 = vmatprep.subr.mxu0 0.0
      %766 = vmatpush2.msra.mxu0 0.0
      %767 = vmatprep.subr.mxu0 0.0
      %768 = vmatpush2.msra.mxu0 0.0
      %769 = vmatprep.mubr.f32.mxu0 0.0
      %770 = vmatmul.mubr.f32.gmra.mxu0 %v703
      %v771 = vpop.f32.mrf.mxu0
      %v772 = vadd.f32 %v606, %v771
      %v773 = vpop.f32.mrf.mxu0
      %v774 = vadd.f32 %v606, %v773
      %775 = vdwg.mxu0
      %776 = vst [vmem:[%s318] sm:$0xff] %v772
      %777 = vst [vmem:[%s318 + $0x8] sm:$0xff] %v774
      %v778 = vadd.f32 %v772, %v774
      %779 = vadd.xlane.f32.xlu0 %v778
      %v780 = vpop.xlane.xlu0 %779
      %781 = vst.msk [vmem:[%s322] sm:$0xff] %vm435, %v780
      %v782 = vmul.f32 %v772, %v772
      %v783 = vmul.f32 %v774, %v774
      %v784 = vadd.f32 %v782, %v783
      %785 = vadd.xlane.f32.xlu0 %v784
      %v786 = vpop.xlane.xlu0 %785
      %787 = vst.msk [vmem:[%s326] sm:$0xff] %vm435, %v786
      %p788 = scmp.lt.s32.totalorder %s20, 1
      %s789 = scalar_select %p788, %s20, 1
      %s790 = smul.addr %s789, 2
      %s791 = smul.addr %s790, 8
      %s792 = scalar_lea.vmem %s6, %s791
      %p793 = scmp.lt.s32.totalorder %s20, 1
      %s794 = scalar_select %p793, %s20, 1
      %s795 = smul.addr %s794, 8
      %s796 = scalar_lea.vmem %s7, %s795
      %p797 = scmp.lt.s32.totalorder %s20, 1
      %s798 = scalar_select %p797, %s20, 1
      %s799 = smul.addr %s798, 8
      %s800 = scalar_lea.vmem %s8, %s799
      // Predicated region
      $region45: #{double_conv_pallas.3} parent=43 // pred_check
        %p801 = pneg %p169
      $region46: #{double_conv_pallas.3} parent=43 // pred_check_branch
        %803 = sbr.rel (%p801) target = $region48
      $region47: #{double_conv_pallas.3} parent=43 // pred_region
        _
      $region48: #{double_conv_pallas.3} parent=43 // pred_fallthru
        _
      // Predicated region
      $region49: #{double_conv_pallas.3} parent=43 // pred_check
        %p804 = pneg %p195
      $region50: #{double_conv_pallas.3} parent=43 // pred_check_branch
        %806 = sbr.rel (%p804) target = $region52
      $region51: #{double_conv_pallas.3} parent=43 // pred_region
        _
      $region52: #{double_conv_pallas.3} parent=43 // pred_fallthru
        _
      // Predicated region
      $region53: #{double_conv_pallas.3} parent=43 // pred_check
        %p807 = pneg %p221
      $region54: #{double_conv_pallas.3} parent=43 // pred_check_branch
        %809 = sbr.rel (%p807) target = $region56
      $region55: #{double_conv_pallas.3} parent=43 // pred_region
        _
      $region56: #{double_conv_pallas.3} parent=43 // pred_fallthru
        _
    $region44: #{double_conv_pallas.3} parent=5 // pred_fallthru
      _
    %p810 = scmp.le.s32.totalorder 2, %s15
    // Predicated region
    $region57: #{double_conv_pallas.3} parent=5 // pred_check
      %p811 = pneg %p810
    $region58: #{double_conv_pallas.3} parent=5 // pred_check_branch
      %813 = sbr.rel (%p811) target = $region60
    $region59: #{double_conv_pallas.3} parent=5 // pred_region
      %s814 = ssub.s32 %s15, 2
      // Predicated region
      $region61: #{double_conv_pallas.3} parent=59 // pred_check
        %p815 = pneg %p175
      $region62: #{double_conv_pallas.3} parent=59 // pred_check_branch
        %817 = sbr.rel (%p815) target = $region64
      $region63: #{double_conv_pallas.3} parent=59 // pred_region
        %p818 = scmp.lt.s32.totalorder %s21, 1
        %s819 = scalar_select %p818, %s21, 1
        %s820 = smul.addr %s819, 2
        %s821 = smul.addr %s820, 8
        %s822 = scalar_lea.vmem %s6, %s821
      $region64: #{double_conv_pallas.3} parent=59 // pred_fallthru
        _
      // Predicated region
      $region65: #{double_conv_pallas.3} parent=59 // pred_check
        %p823 = pneg %p201
      $region66: #{double_conv_pallas.3} parent=59 // pred_check_branch
        %825 = sbr.rel (%p823) target = $region68
      $region67: #{double_conv_pallas.3} parent=59 // pred_region
        %p826 = scmp.lt.s32.totalorder %s21, 1
        %s827 = scalar_select %p826, %s21, 1
        %s828 = smul.addr %s827, 8
        %s829 = scalar_lea.vmem %s7, %s828
      $region68: #{double_conv_pallas.3} parent=59 // pred_fallthru
        _
      // Predicated region
      $region69: #{double_conv_pallas.3} parent=59 // pred_check
        %p830 = pneg %p227
      $region70: #{double_conv_pallas.3} parent=59 // pred_check_branch
        %832 = sbr.rel (%p830) target = $region72
      $region71: #{double_conv_pallas.3} parent=59 // pred_region
        %p833 = scmp.lt.s32.totalorder %s21, 1
        %s834 = scalar_select %p833, %s21, 1
        %s835 = smul.addr %s834, 8
        %s836 = scalar_lea.vmem %s8, %s835
      $region72: #{double_conv_pallas.3} parent=59 // pred_fallthru
        _
    $region60: #{double_conv_pallas.3} parent=5 // pred_fallthru
      _
  $region6: #{double_conv_pallas.3} parent=0 // loop_footer
    %s19 = sadd.s32 1, %s15
  $region7: #{double_conv_pallas.3} parent=0 // loop_footer_branch
    %14 = sbr.rel target = $region3
  $region8: #{double_conv_pallas.3} parent=0 // loop_exit
    _

// kernel: double_conv_pallas.4
$region0: #{double_conv_pallas.4}
  #allocation0 [shape = 'u32[]', space=smem, size = 0x4, offset = 0x4, fixed_abs, tag = 'smem constant byte address 0x4 - core index']
  #allocation1 [shape = 'u32[144,128]{1,0:T(1,128)}', space=vmem, size = 0x12000, scoped, tag = 'internal scratch']
  %s0 = inlined_call_operand.vmem [shape: f32[2,8,256], index: 0, kind: input, shape index: {}]
  %s1 = inlined_call_operand.vmem [shape: f32[8,72], index: 1, kind: input, shape index: {}]
  %s2 = inlined_call_operand.vmem [shape: f32[8,1], index: 2, kind: input, shape index: {}]
  %s3 = inlined_call_operand.vmem [shape: f32[8,1], index: 3, kind: input, shape index: {}]
  %s4 = inlined_call_operand.vmem [shape: f32[8,1], index: 4, kind: input, shape index: {}]
  %s5 = inlined_call_operand.vmem [shape: f32[9,256], index: 5, kind: input, shape index: {}]
  %s6 = inlined_call_operand.vmem [shape: f32[2,8,256], index: 6, kind: output, shape index: {0}]
  %s7 = inlined_call_operand.vmem [shape: f32[2,8,1], index: 7, kind: output, shape index: {1}]
  %s8 = inlined_call_operand.vmem [shape: f32[2,8,1], index: 8, kind: output, shape index: {2}]
  %9 = xla_tuple %s6, %s7, %s8
  %s10 = sld [smem:[#allocation0]]
  $region73: #{double_conv_pallas.4} parent=0
    _
  %s12 = ssub.s32 1, %s10
  %s13 = scalar_select 0, %s12, %s10
  loop: start=0, step=1, limit=4
  $region2: #{double_conv_pallas.4} parent=0 // loop_pre_header
    _
  $region3: #{double_conv_pallas.4} parent=0 // loop_header
    %s15 = sphi 0, %s19
    %p16 = scmp.ge.s32.totalorder %s15, 4
    %s25 = sphi 0, %s27
    %s28 = sphi 0, %s25
    %s29 = sphi 0, %s28
    %s45 = sphi 0, %s29
    %s49 = sphi 0, %s49
    %s51 = sphi 0, %s49
    %s52 = sphi 0, %s51
    %s66 = sphi 0, %s52
    %s70 = sphi 0, %s70
    %s72 = sphi 0, %s70
    %s73 = sphi 0, %s72
    %s87 = sphi 0, %s73
    %s91 = sphi 0, %s91
    %s93 = sphi 0, %s91
    %s94 = sphi 0, %s93
    %s108 = sphi 0, %s94
    %s112 = sphi 0, %s112
    %s114 = sphi 0, %s112
    %s115 = sphi 0, %s114
    %s129 = sphi 0, %s115
    %s133 = sphi 0, %s133
    %s135 = sphi 0, %s133
    %s136 = sphi 0, %s135
    %s150 = sphi 0, %s136
    %s156 = sphi 0, %s158
    %s159 = sphi 0, %s156
    %s160 = sphi 0, %s159
    %s176 = sphi 0, %s160
    %s182 = sphi 0, %s184
    %s185 = sphi 0, %s182
    %s186 = sphi 0, %s185
    %s202 = sphi 0, %s186
    %s208 = sphi 0, %s210
    %s211 = sphi 0, %s208
    %s212 = sphi 0, %s211
    %s228 = sphi 0, %s212
  $region4: #{double_conv_pallas.4} parent=0 // loop_header_branch
    %18 = sbr.rel (%p16) target = $region8
  $region5: #{double_conv_pallas.4} parent=0 // loop_body
    %s20 = ssub.s32 %s15, 1
    %s21 = ssub.s32 %s15, 2
    %s22 = sadd.s32 %s15, 1
    %s23 = ssub.s32 %s15, %s22
    %p24 = scmp.eq.s32.totalorder %s23, 0
    %s26 = sadd.s32 %s25, 1
    %s27 = scalar_select %p24, %s25, %s26
    %p30 = pneg %p24
    %p31 = scmp.eq.s32.totalorder %s15, 1
    %p32 = por %p30, %p31
    %p33 = scmp.ne.s32.totalorder %s25, %s28
    %p34 = scmp.eq.s32.totalorder %s15, 0
    %p35 = por %p33, %p34
    %p36 = scmp.ne.s32.totalorder %s25, %s28
    %p37 = scmp.eq.s32.totalorder %s20, 1
    %p38 = por %p36, %p37
    %p39 = scmp.ne.s32.totalorder %s28, %s29
    %p40 = scmp.eq.s32.totalorder %s20, 0
    %p41 = por %p39, %p40
    %p42 = scmp.ne.s32.totalorder %s28, %s29
    %p43 = scmp.eq.s32.totalorder %s21, 1
    %p44 = por %p42, %p43
    %p46 = scmp.ne.s32.totalorder %s29, %s45
    %p47 = scmp.eq.s32.totalorder %s21, 0
    %p48 = por %p46, %p47
    %s50 = sadd.s32 %s49, 1
    %p53 = scmp.eq.s32.totalorder %s15, 1
    %p54 = scmp.ne.s32.totalorder %s49, %s51
    %p55 = scmp.eq.s32.totalorder %s15, 0
    %p56 = por %p54, %p55
    %p57 = scmp.ne.s32.totalorder %s49, %s51
    %p58 = scmp.eq.s32.totalorder %s20, 1
    %p59 = por %p57, %p58
    %p60 = scmp.ne.s32.totalorder %s51, %s52
    %p61 = scmp.eq.s32.totalorder %s20, 0
    %p62 = por %p60, %p61
    %p63 = scmp.ne.s32.totalorder %s51, %s52
    %p64 = scmp.eq.s32.totalorder %s21, 1
    %p65 = por %p63, %p64
    %p67 = scmp.ne.s32.totalorder %s52, %s66
    %p68 = scmp.eq.s32.totalorder %s21, 0
    %p69 = por %p67, %p68
    %s71 = sadd.s32 %s70, 1
    %p74 = scmp.eq.s32.totalorder %s15, 1
    %p75 = scmp.ne.s32.totalorder %s70, %s72
    %p76 = scmp.eq.s32.totalorder %s15, 0
    %p77 = por %p75, %p76
    %p78 = scmp.ne.s32.totalorder %s70, %s72
    %p79 = scmp.eq.s32.totalorder %s20, 1
    %p80 = por %p78, %p79
    %p81 = scmp.ne.s32.totalorder %s72, %s73
    %p82 = scmp.eq.s32.totalorder %s20, 0
    %p83 = por %p81, %p82
    %p84 = scmp.ne.s32.totalorder %s72, %s73
    %p85 = scmp.eq.s32.totalorder %s21, 1
    %p86 = por %p84, %p85
    %p88 = scmp.ne.s32.totalorder %s73, %s87
    %p89 = scmp.eq.s32.totalorder %s21, 0
    %p90 = por %p88, %p89
    %s92 = sadd.s32 %s91, 1
    %p95 = scmp.eq.s32.totalorder %s15, 1
    %p96 = scmp.ne.s32.totalorder %s91, %s93
    %p97 = scmp.eq.s32.totalorder %s15, 0
    %p98 = por %p96, %p97
    %p99 = scmp.ne.s32.totalorder %s91, %s93
    %p100 = scmp.eq.s32.totalorder %s20, 1
    %p101 = por %p99, %p100
    %p102 = scmp.ne.s32.totalorder %s93, %s94
    %p103 = scmp.eq.s32.totalorder %s20, 0
    %p104 = por %p102, %p103
    %p105 = scmp.ne.s32.totalorder %s93, %s94
    %p106 = scmp.eq.s32.totalorder %s21, 1
    %p107 = por %p105, %p106
    %p109 = scmp.ne.s32.totalorder %s94, %s108
    %p110 = scmp.eq.s32.totalorder %s21, 0
    %p111 = por %p109, %p110
    %s113 = sadd.s32 %s112, 1
    %p116 = scmp.eq.s32.totalorder %s15, 1
    %p117 = scmp.ne.s32.totalorder %s112, %s114
    %p118 = scmp.eq.s32.totalorder %s15, 0
    %p119 = por %p117, %p118
    %p120 = scmp.ne.s32.totalorder %s112, %s114
    %p121 = scmp.eq.s32.totalorder %s20, 1
    %p122 = por %p120, %p121
    %p123 = scmp.ne.s32.totalorder %s114, %s115
    %p124 = scmp.eq.s32.totalorder %s20, 0
    %p125 = por %p123, %p124
    %p126 = scmp.ne.s32.totalorder %s114, %s115
    %p127 = scmp.eq.s32.totalorder %s21, 1
    %p128 = por %p126, %p127
    %p130 = scmp.ne.s32.totalorder %s115, %s129
    %p131 = scmp.eq.s32.totalorder %s21, 0
    %p132 = por %p130, %p131
    %s134 = sadd.s32 %s133, 1
    %p137 = scmp.eq.s32.totalorder %s15, 1
    %p138 = scmp.ne.s32.totalorder %s133, %s135
    %p139 = scmp.eq.s32.totalorder %s15, 0
    %p140 = por %p138, %p139
    %p141 = scmp.ne.s32.totalorder %s133, %s135
    %p142 = scmp.eq.s32.totalorder %s20, 1
    %p143 = por %p141, %p142
    %p144 = scmp.ne.s32.totalorder %s135, %s136
    %p145 = scmp.eq.s32.totalorder %s20, 0
    %p146 = por %p144, %p145
    %p147 = scmp.ne.s32.totalorder %s135, %s136
    %p148 = scmp.eq.s32.totalorder %s21, 1
    %p149 = por %p147, %p148
    %p151 = scmp.ne.s32.totalorder %s136, %s150
    %p152 = scmp.eq.s32.totalorder %s21, 0
    %p153 = por %p151, %p152
    %s154 = ssub.s32 %s15, %s22
    %p155 = scmp.eq.s32.totalorder %s154, 0
    %s157 = sadd.s32 %s156, 1
    %s158 = scalar_select %p155, %s156, %s157
    %p161 = pneg %p155
    %p162 = scmp.eq.s32.totalorder %s15, 1
    %p163 = por %p161, %p162
    %p164 = scmp.ne.s32.totalorder %s156, %s159
    %p165 = scmp.eq.s32.totalorder %s15, 0
    %p166 = por %p164, %p165
    %p167 = scmp.ne.s32.totalorder %s156, %s159
    %p168 = scmp.eq.s32.totalorder %s20, 1
    %p169 = por %p167, %p168
    %p170 = scmp.ne.s32.totalorder %s159, %s160
    %p171 = scmp.eq.s32.totalorder %s20, 0
    %p172 = por %p170, %p171
    %p173 = scmp.ne.s32.totalorder %s159, %s160
    %p174 = scmp.eq.s32.totalorder %s21, 1
    %p175 = por %p173, %p174
    %p177 = scmp.ne.s32.totalorder %s160, %s176
    %p178 = scmp.eq.s32.totalorder %s21, 0
    %p179 = por %p177, %p178
    %s180 = ssub.s32 %s15, %s22
    %p181 = scmp.eq.s32.totalorder %s180, 0
    %s183 = sadd.s32 %s182, 1
    %s184 = scalar_select %p181, %s182, %s183
    %p187 = pneg %p181
    %p188 = scmp.eq.s32.totalorder %s15, 1
    %p189 = por %p187, %p188
    %p190 = scmp.ne.s32.totalorder %s182, %s185
    %p191 = scmp.eq.s32.totalorder %s15, 0
    %p192 = por %p190, %p191
    %p193 = scmp.ne.s32.totalorder %s182, %s185
    %p194 = scmp.eq.s32.totalorder %s20, 1
    %p195 = por %p193, %p194
    %p196 = scmp.ne.s32.totalorder %s185, %s186
    %p197 = scmp.eq.s32.totalorder %s20, 0
    %p198 = por %p196, %p197
    %p199 = scmp.ne.s32.totalorder %s185, %s186
    %p200 = scmp.eq.s32.totalorder %s21, 1
    %p201 = por %p199, %p200
    %p203 = scmp.ne.s32.totalorder %s186, %s202
    %p204 = scmp.eq.s32.totalorder %s21, 0
    %p205 = por %p203, %p204
    %s206 = ssub.s32 %s15, %s22
    %p207 = scmp.eq.s32.totalorder %s206, 0
    %s209 = sadd.s32 %s208, 1
    %s210 = scalar_select %p207, %s208, %s209
    %p213 = pneg %p207
    %p214 = scmp.eq.s32.totalorder %s15, 1
    %p215 = por %p213, %p214
    %p216 = scmp.ne.s32.totalorder %s208, %s211
    %p217 = scmp.eq.s32.totalorder %s15, 0
    %p218 = por %p216, %p217
    %p219 = scmp.ne.s32.totalorder %s208, %s211
    %p220 = scmp.eq.s32.totalorder %s20, 1
    %p221 = por %p219, %p220
    %p222 = scmp.ne.s32.totalorder %s211, %s212
    %p223 = scmp.eq.s32.totalorder %s20, 0
    %p224 = por %p222, %p223
    %p225 = scmp.ne.s32.totalorder %s211, %s212
    %p226 = scmp.eq.s32.totalorder %s21, 1
    %p227 = por %p225, %p226
    %p229 = scmp.ne.s32.totalorder %s212, %s228
    %p230 = scmp.eq.s32.totalorder %s21, 0
    %p231 = por %p229, %p230
    %p232 = scmp.le.s32.totalorder 1, %s15
    %p233 = scmp.lt.s32.totalorder %s15, 3
    %p234 = pnand %p232, %p233
    %p235 = pneg %p234
    // Predicated region
    $region9: #{double_conv_pallas.4} parent=5 // pred_check
      _
    $region10: #{double_conv_pallas.4} parent=5 // pred_check_branch
      %237 = sbr.rel (%p234) target = $region12
    $region11: #{double_conv_pallas.4} parent=5 // pred_region
      %s238 = ssub.s32 %s15, 1
      // Predicated region
      $region13: #{double_conv_pallas.4} parent=11 // pred_check
        %p239 = pneg %p62
      $region14: #{double_conv_pallas.4} parent=11 // pred_check_branch
        %241 = sbr.rel (%p239) target = $region16
      $region15: #{double_conv_pallas.4} parent=11 // pred_region
        _
      $region16: #{double_conv_pallas.4} parent=11 // pred_fallthru
        _
      // Predicated region
      $region17: #{double_conv_pallas.4} parent=11 // pred_check
        %p242 = pneg %p83
      $region18: #{double_conv_pallas.4} parent=11 // pred_check_branch
        %244 = sbr.rel (%p242) target = $region20
      $region19: #{double_conv_pallas.4} parent=11 // pred_region
        _
      $region20: #{double_conv_pallas.4} parent=11 // pred_fallthru
        _
      // Predicated region
      $region21: #{double_conv_pallas.4} parent=11 // pred_check
        %p245 = pneg %p104
      $region22: #{double_conv_pallas.4} parent=11 // pred_check_branch
        %247 = sbr.rel (%p245) target = $region24
      $region23: #{double_conv_pallas.4} parent=11 // pred_region
        _
      $region24: #{double_conv_pallas.4} parent=11 // pred_fallthru
        _
      // Predicated region
      $region25: #{double_conv_pallas.4} parent=11 // pred_check
        %p248 = pneg %p125
      $region26: #{double_conv_pallas.4} parent=11 // pred_check_branch
        %250 = sbr.rel (%p248) target = $region28
      $region27: #{double_conv_pallas.4} parent=11 // pred_region
        _
      $region28: #{double_conv_pallas.4} parent=11 // pred_fallthru
        _
      // Predicated region
      $region29: #{double_conv_pallas.4} parent=11 // pred_check
        %p251 = pneg %p146
      $region30: #{double_conv_pallas.4} parent=11 // pred_check_branch
        %253 = sbr.rel (%p251) target = $region32
      $region31: #{double_conv_pallas.4} parent=11 // pred_region
        _
      $region32: #{double_conv_pallas.4} parent=11 // pred_fallthru
        _
    $region12: #{double_conv_pallas.4} parent=5 // pred_fallthru
      _
    %p254 = scmp.lt.s32.totalorder %s15, 2
    // Predicated region
    $region33: #{double_conv_pallas.4} parent=5 // pred_check
      %p255 = pneg %p254
    $region34: #{double_conv_pallas.4} parent=5 // pred_check_branch
      %257 = sbr.rel (%p255) target = $region36
    $region35: #{double_conv_pallas.4} parent=5 // pred_region
      // Predicated region
      $region37: #{double_conv_pallas.4} parent=35 // pred_check
        %p258 = pneg %p35
      $region38: #{double_conv_pallas.4} parent=35 // pred_check_branch
        %260 = sbr.rel (%p258) target = $region40
      $region39: #{double_conv_pallas.4} parent=35 // pred_region
        %p261 = scmp.lt.s32.totalorder %s15, 1
        %s262 = scalar_select %p261, %s15, 1
        %s263 = smul.addr %s262, 2
        %s264 = smul.addr %s263, 8
        %s265 = scalar_lea.vmem %s0, %s264
      $region40: #{double_conv_pallas.4} parent=35 // pred_fallthru
        _
    $region36: #{double_conv_pallas.4} parent=5 // pred_fallthru
      _
    %p266 = scmp.le.s32.totalorder 1, %s15
    %p267 = scmp.lt.s32.totalorder %s15, 3
    %p268 = pnand %p266, %p267
    %p269 = pneg %p268
    // Predicated region
    $region41: #{double_conv_pallas.4} parent=5 // pred_check
      _
    $region42: #{double_conv_pallas.4} parent=5 // pred_check_branch
      %271 = sbr.rel (%p268) target = $region44
    $region43: #{double_conv_pallas.4} parent=5 // pred_region
      %s272 = ssub.s32 %s15, 1
      %p273 = scmp.lt.s32.totalorder %s20, 1
      %s274 = scalar_select %p273, %s20, 1
      %s275 = smul.addr %s274, 2
      %s276 = smul.addr %s275, 8
      %s277 = scalar_lea.vmem %s0, %s276
      %p278 = pneg %p41
      %p279 = pneg %p38
      %p280 = pneg %p62
      %p281 = pneg %p59
      %p282 = pneg %p83
      %p283 = pneg %p80
      %p284 = pneg %p104
      %p285 = pneg %p101
      %p286 = pneg %p125
      %p287 = pneg %p122
      %p288 = pneg %p146
      %p289 = pneg %p143
      %p290 = pneg %p172
      %p291 = pneg %p169
      %p292 = scmp.lt.s32.totalorder %s20, 1
      %s293 = scalar_select %p292, %s20, 1
      %s294 = smul.addr %s293, 2
      %s295 = smul.addr %s294, 8
      %s296 = scalar_lea.vmem %s6, %s295
      %p297 = pneg %p198
      %p298 = pneg %p195
      %p299 = scmp.lt.s32.totalorder %s20, 1
      %s300 = scalar_select %p299, %s20, 1
      %s301 = smul.addr %s300, 8
      %s302 = scalar_lea.vmem %s7, %s301
      %p303 = pneg %p224
      %p304 = pneg %p221
      %p305 = scmp.lt.s32.totalorder %s20, 1
      %s306 = scalar_select %p305, %s20, 1
      %s307 = smul.addr %s306, 8
      %s308 = scalar_lea.vmem %s8, %s307
      %p309 = scmp.lt.s32.totalorder %s20, 1
      %s310 = scalar_select %p309, %s20, 1
      %s311 = smul.addr %s310, 2
      %s312 = smul.addr %s311, 8
      %s313 = scalar_lea.vmem %s0, %s312
      %p314 = scmp.lt.s32.totalorder %s20, 1
      %s315 = scalar_select %p314, %s20, 1
      %s316 = smul.addr %s315, 2
      %s317 = smul.addr %s316, 8
      %s318 = scalar_lea.vmem %s6, %s317
      %p319 = scmp.lt.s32.totalorder %s20, 1
      %s320 = scalar_select %p319, %s20, 1
      %s321 = smul.addr %s320, 8
      %s322 = scalar_lea.vmem %s7, %s321
      %p323 = scmp.lt.s32.totalorder %s20, 1
      %s324 = scalar_select %p323, %s20, 1
      %s325 = smul.addr %s324, 8
      %s326 = scalar_lea.vmem %s8, %s325
      %v327 = vld [vmem:[%s313] sm:$0xff]
      %v328 = vld [vmem:[%s313 + $0x8] sm:$0xff]
      %v329 = vld [vmem:[%s3] sm:$0xff]
      %331 = vset.pattern.permute.xlu0 0
      %332 = vperm.xlu0 %331, %v329
      %v333 = vpop.permute.xlu0 %332
      %v335 = vmul.f32 %v327, %v333
      %v336 = vmul.f32 %v328, %v333
      %v337 = vld [vmem:[%s4] sm:$0xff]
      %339 = vset.pattern.permute.xlu0 0
      %340 = vperm.xlu0 %339, %v337
      %v341 = vpop.permute.xlu0 %340
      %v343 = vadd.f32 %v335, %v341
      %v344 = vadd.f32 %v336, %v341
      %v345 = vmax.f32 %v343, 0.0
      %v346 = vmax.f32 %v344, 0.0
      %v347 = vld [vmem:[%s5] ss:$8 sm:$0x3]
      %v349 = vlaneseq
      %v350 = vshrl.u32 %v349, 7
      %v351 = vsub.s32 0, %v350
      %v352 = vrot.slane %v347, %v351
      %v353 = vlaneseq
      %v354 = vshrl.u32 %v353, 7
      %v355 = vsub.s32 1, %v354
      %v356 = vrot.slane %v347, %v355
      %357 = vrot.lane.b32.xlu0 %v352, 111
      %v358 = vpop.permute.xlu0 %357
      %359 = vrot.lane.b32.xlu0 %v356, 111
      %v360 = vpop.permute.xlu0 %359
      %vm361 = vcmask 908288
      %v362 = vsel %vm361, %v358, %v360
      %v366 = vmul.f32 %v358, 0.0
      %v367 = vmul.f32 %v345, %v362
      %v368 = vmul.f32 %v346, %v360
      %s369 = scalar_lea.vmem %s5, 1
      %v370 = vld [vmem:[%s369] ss:$8 sm:$0x3]
      %v372 = vlaneseq
      %v373 = vshrl.u32 %v372, 7
      %v374 = vsub.s32 0, %v373
      %v375 = vrot.slane %v370, %v374
      %v376 = vlaneseq
      %v377 = vshrl.u32 %v376, 7
      %v378 = vsub.s32 1, %v377
      %v379 = vrot.slane %v370, %v378
      %380 = vrot.lane.b32.xlu0 %v375, 112
      %v381 = vpop.permute.xlu0 %380
      %382 = vrot.lane.b32.xlu0 %v379, 112
      %v383 = vpop.permute.xlu0 %382
      %vm384 = vcmask 916480
      %v385 = vsel %vm384, %v381, %v383
      %v389 = vmul.f32 %v381, 0.0
      %v390 = vmul.f32 %v345, %v385
      %v391 = vmul.f32 %v346, %v383
      %s392 = scalar_lea.vmem %s5, 2
      %v393 = vld [vmem:[%s392] ss:$8 sm:$0x3]
      %v395 = vlaneseq
      %v396 = vshrl.u32 %v395, 7
      %v397 = vsub.s32 0, %v396
      %v398 = vrot.slane %v393, %v397
      %v399 = vlaneseq
      %v400 = vshrl.u32 %v399, 7
      %v401 = vsub.s32 1, %v400
      %v402 = vrot.slane %v393, %v401
      %403 = vrot.lane.b32.xlu0 %v398, 113
      %v404 = vpop.permute.xlu0 %403
      %405 = vrot.lane.b32.xlu0 %v402, 113
      %v406 = vpop.permute.xlu0 %405
      %vm407 = vcmask 924672
      %v408 = vsel %vm407, %v404, %v406
      %v412 = vmul.f32 %v404, 0.0
      %v413 = vmul.f32 %v345, %v408
      %v414 = vmul.f32 %v346, %v406
      %s415 = scalar_lea.vmem %s5, 3
      %v416 = vld [vmem:[%s415] ss:$8 sm:$0x3]
      %v418 = vlaneseq
      %v419 = vshrl.u32 %v418, 7
      %v420 = vsub.s32 0, %v419
      %v421 = vrot.slane %v416, %v420
      %v422 = vlaneseq
      %v423 = vshrl.u32 %v422, 7
      %v424 = vsub.s32 1, %v423
      %v425 = vrot.slane %v416, %v424
      %426 = vrot.lane.b32.xlu0 %v421, 127
      %v427 = vpop.permute.xlu0 %426
      %428 = vrot.lane.b32.xlu0 %v425, 127
      %v429 = vpop.permute.xlu0 %428
      %vm430 = vcmask 1039360
      %v431 = vsel %vm430, %v427, %v429
      %v435 = vmul.f32 %v427, 0.0
      %v436 = vmul.f32 %v345, %v431
      %v437 = vmul.f32 %v346, %v429
      %s438 = scalar_lea.vmem %s5, 5
      %v439 = vld [vmem:[%s438] ss:$8 sm:$0x3]
      %v441 = vlaneseq
      %v442 = vshrl.u32 %v441, 7
      %v443 = vsub.s32 0, %v442
      %v444 = vrot.slane %v439, %v443
      %v445 = vlaneseq
      %v446 = vshrl.u32 %v445, 7
      %v447 = vsub.s32 1, %v446
      %v448 = vrot.slane %v439, %v447
      %449 = vrot.lane.b32.xlu0 %v444, 1
      %v450 = vpop.permute.xlu0 %449
      %451 = vrot.lane.b32.xlu0 %v448, 1
      %v452 = vpop.permute.xlu0 %451
      %vm453 = vcmask 7168
      %v454 = vsel %vm453, %v450, %v452
      %v458 = vmul.f32 %v345, %v450
      %v459 = vmul.f32 %v346, %v454
      %v460 = vmul.f32 %v452, 0.0
      %s461 = scalar_lea.vmem %s5, 6
      %v462 = vld [vmem:[%s461] ss:$8 sm:$0x3]
      %v464 = vlaneseq
      %v465 = vshrl.u32 %v464, 7
      %v466 = vsub.s32 0, %v465
      %v467 = vrot.slane %v462, %v466
      %v468 = vlaneseq
      %v469 = vshrl.u32 %v468, 7
      %v470 = vsub.s32 1, %v469
      %v471 = vrot.slane %v462, %v470
      %472 = vrot.lane.b32.xlu0 %v467, 15
      %v473 = vpop.permute.xlu0 %472
      %474 = vrot.lane.b32.xlu0 %v471, 15
      %v475 = vpop.permute.xlu0 %474
      %vm476 = vcmask 121856
      %v477 = vsel %vm476, %v473, %v475
      %v481 = vmul.f32 %v345, %v473
      %v482 = vmul.f32 %v346, %v477
      %v483 = vmul.f32 %v475, 0.0
      %s484 = scalar_lea.vmem %s5, 7
      %v485 = vld [vmem:[%s484] ss:$8 sm:$0x3]
      %v487 = vlaneseq
      %v488 = vshrl.u32 %v487, 7
      %v489 = vsub.s32 0, %v488
      %v490 = vrot.slane %v485, %v489
      %v491 = vlaneseq
      %v492 = vshrl.u32 %v491, 7
      %v493 = vsub.s32 1, %v492
      %v494 = vrot.slane %v485, %v493
      %495 = vrot.lane.b32.xlu0 %v490, 16
      %v496 = vpop.permute.xlu0 %495
      %497 = vrot.lane.b32.xlu0 %v494, 16
      %v498 = vpop.permute.xlu0 %497
      %vm499 = vcmask 130048
      %v500 = vsel %vm499, %v496, %v498
      %v504 = vmul.f32 %v345, %v496
      %v505 = vmul.f32 %v346, %v500
      %v506 = vmul.f32 %v498, 0.0
      %s507 = scalar_lea.vmem %s5, 16
      %v508 = vld [vmem:[%s507] ss:$8 sm:$0x3]
      %v510 = vlaneseq
      %v511 = vshrl.u32 %v510, 7
      %v512 = vsub.s32 0, %v511
      %v513 = vrot.slane %v508, %v512
      %v514 = vlaneseq
      %v515 = vshrl.u32 %v514, 7
      %v516 = vsub.s32 1, %v515
      %v517 = vrot.slane %v508, %v516
      %518 = vrot.lane.b32.xlu0 %v513, 17
      %v519 = vpop.permute.xlu0 %518
      %520 = vrot.lane.b32.xlu0 %v517, 17
      %v521 = vpop.permute.xlu0 %520
      %vm522 = vcmask 138240
      %v523 = vsel %vm522, %v519, %v521
      %v527 = vmul.f32 %v345, %v519
      %v528 = vmul.f32 %v346, %v523
      %v529 = vmul.f32 %v521, 0.0
      %533 = vrot.lane.b32.xlu0 %v389, 127
      %v534 = vpop.permute.xlu0 %533
      %535 = vrot.lane.b32.xlu0 %v390, 127
      %v536 = vpop.permute.xlu0 %535
      %537 = vrot.lane.b32.xlu0 %v391, 127
      %v538 = vpop.permute.xlu0 %537
      %v539 = vsel %vm430, %v534, %v536
      %v540 = vsel %vm430, %v536, %v538
      %544 = vrot.lane.b32.xlu0 %v412, 126
      %v545 = vpop.permute.xlu0 %544
      %546 = vrot.lane.b32.xlu0 %v413, 126
      %v547 = vpop.permute.xlu0 %546
      %548 = vrot.lane.b32.xlu0 %v414, 126
      %v549 = vpop.permute.xlu0 %548
      %vm550 = vcmask 1031168
      %v551 = vsel %vm550, %v545, %v547
      %v552 = vsel %vm550, %v547, %v549
      %556 = vrot.lane.b32.xlu0 %v435, 112
      %v557 = vpop.permute.xlu0 %556
      %558 = vrot.lane.b32.xlu0 %v436, 112
      %v559 = vpop.permute.xlu0 %558
      %560 = vrot.lane.b32.xlu0 %v437, 112
      %v561 = vpop.permute.xlu0 %560
      %v562 = vsel %vm384, %v557, %v559
      %v563 = vsel %vm384, %v559, %v561
      %566 = vrot.lane.b32.xlu0 %v345, 111
      %v567 = vpop.permute.xlu0 %566
      %568 = vrot.lane.b32.xlu0 %v346, 111
      %v569 = vpop.permute.xlu0 %568
      %v570 = vsel %vm361, %v567, %v569
      %574 = vrot.lane.b32.xlu0 %v458, 110
      %v575 = vpop.permute.xlu0 %574
      %576 = vrot.lane.b32.xlu0 %v459, 110
      %v577 = vpop.permute.xlu0 %576
      %578 = vrot.lane.b32.xlu0 %v460, 110
      %v579 = vpop.permute.xlu0 %578
      %vm580 = vcmask 900096
      %v581 = vsel %vm580, %v575, %v577
      %v582 = vsel %vm580, %v577, %v579
      %586 = vrot.lane.b32.xlu0 %v481, 96
      %v587 = vpop.permute.xlu0 %586
      %588 = vrot.lane.b32.xlu0 %v482, 96
      %v589 = vpop.permute.xlu0 %588
      %590 = vrot.lane.b32.xlu0 %v483, 96
      %v591 = vpop.permute.xlu0 %590
      %vm592 = vcmask 785408
      %v593 = vsel %vm592, %v587, %v589
      %v594 = vsel %vm592, %v589, %v591
      %598 = vrot.lane.b32.xlu0 %v504, 95
      %v599 = vpop.permute.xlu0 %598
      %600 = vrot.lane.b32.xlu0 %v505, 95
      %v601 = vpop.permute.xlu0 %600
      %602 = vrot.lane.b32.xlu0 %v506, 95
      %v603 = vpop.permute.xlu0 %602
      %vm604 = vcmask 777216
      %v605 = vsel %vm604, %v599, %v601
      %v606 = vsel %vm604, %v601, %v603
      %610 = vrot.lane.b32.xlu0 %v527, 94
      %v611 = vpop.permute.xlu0 %610
      %612 = vrot.lane.b32.xlu0 %v528, 94
      %v613 = vpop.permute.xlu0 %612
      %614 = vrot.lane.b32.xlu0 %v529, 94
      %v615 = vpop.permute.xlu0 %614
      %vm616 = vcmask 769024
      %v617 = vsel %vm616, %v611, %v613
      %v618 = vsel %vm616, %v613, %v615
      %v619 = vld [vmem:[%s1] sm:$0xff]
      %v620 = vld [vmem:[%s2] sm:$0xff]
      %622 = vset.pattern.permute.xlu0 0
      %623 = vperm.xlu0 %622, %v620
      %v624 = vpop.permute.xlu0 %623
      %629 = vrot.lane.b32.xlu0 %v366, 17
      %v630 = vpop.permute.xlu0 %629
      %631 = vrot.lane.b32.xlu0 %v367, 17
      %v632 = vpop.permute.xlu0 %631
      %633 = vrot.lane.b32.xlu0 %v368, 17
      %v634 = vpop.permute.xlu0 %633
      %635 = vrot.lane.b32.xlu0 %v539, 17
      %v636 = vpop.permute.xlu0 %635
      %637 = vrot.lane.b32.xlu0 %v540, 17
      %v638 = vpop.permute.xlu0 %637
      %639 = vrot.lane.b32.xlu0 %v538, 17
      %v640 = vpop.permute.xlu0 %639
      %641 = vrot.lane.b32.xlu0 %v551, 17
      %v642 = vpop.permute.xlu0 %641
      %643 = vrot.lane.b32.xlu0 %v552, 17
      %v644 = vpop.permute.xlu0 %643
      %645 = vrot.lane.b32.xlu0 %v549, 17
      %v646 = vpop.permute.xlu0 %645
      %647 = vrot.lane.b32.xlu0 %v562, 17
      %v648 = vpop.permute.xlu0 %647
      %649 = vrot.lane.b32.xlu0 %v563, 17
      %v650 = vpop.permute.xlu0 %649
      %651 = vrot.lane.b32.xlu0 %v561, 17
      %v652 = vpop.permute.xlu0 %651
      %653 = vrot.lane.b32.xlu0 %v567, 17
      %v654 = vpop.permute.xlu0 %653
      %655 = vrot.lane.b32.xlu0 %v570, 17
      %v656 = vpop.permute.xlu0 %655
      %657 = vrot.lane.b32.xlu0 %v569, 17
      %v658 = vpop.permute.xlu0 %657
      %659 = vrot.lane.b32.xlu0 %v575, 17
      %v660 = vpop.permute.xlu0 %659
      %661 = vrot.lane.b32.xlu0 %v581, 17
      %v662 = vpop.permute.xlu0 %661
      %663 = vrot.lane.b32.xlu0 %v582, 17
      %v664 = vpop.permute.xlu0 %663
      %665 = vrot.lane.b32.xlu0 %v587, 17
      %v666 = vpop.permute.xlu0 %665
      %667 = vrot.lane.b32.xlu0 %v593, 17
      %v668 = vpop.permute.xlu0 %667
      %669 = vrot.lane.b32.xlu0 %v594, 17
      %v670 = vpop.permute.xlu0 %669
      %671 = vrot.lane.b32.xlu0 %v599, 17
      %v672 = vpop.permute.xlu0 %671
      %673 = vrot.lane.b32.xlu0 %v605, 17
      %v674 = vpop.permute.xlu0 %673
      %675 = vrot.lane.b32.xlu0 %v606, 17
      %v676 = vpop.permute.xlu0 %675
      %677 = vrot.lane.b32.xlu0 %v611, 17
      %v678 = vpop.permute.xlu0 %677
      %679 = vrot.lane.b32.xlu0 %v617, 17
      %v680 = vpop.permute.xlu0 %679
      %681 = vrot.lane.b32.xlu0 %v618, 17
      %v682 = vpop.permute.xlu0 %681
      %v683 = vsel %vm522, %v630, %v632
      %v684 = vsel %vm522, %v632, %v634
      %v685 = vsel %vm522, %v636, %v638
      %v686 = vsel %vm522, %v638, %v640
      %v687 = vsel %vm522, %v642, %v644
      %v688 = vsel %vm522, %v644, %v646
      %v689 = vsel %vm522, %v648, %v650
      %v690 = vsel %vm522, %v650, %v652
      %v691 = vsel %vm522, %v654, %v656
      %v692 = vsel %vm522, %v656, %v658
      %v693 = vsel %vm522, %v660, %v662
      %v694 = vsel %vm522, %v662, %v664
      %v695 = vsel %vm522, %v666, %v668
      %v696 = vsel %vm522, %v668, %v670
      %v697 = vsel %vm522, %v672, %v674
      %v698 = vsel %vm522, %v674, %v676
      %v699 = vsel %vm522, %v678, %v680
      %v700 = vsel %vm522, %v680, %v682
      %vm719 = vcmask 588800
      %v721 = vsel %vm719, %v619, 0
      %723 = vmatprep.subr.mxu0 0.0
      %724 = vmatpush1.msra.mxu0 0.0
      %725 = vmatprep.subr.mxu0 0.0
      %726 = vmatpush1.msra.mxu0 0.0
      %727 = vmatprep.subr.mxu0 0.0
      %728 = vmatpush1.msra.mxu0 0.0
      %729 = vmatprep.subr.mxu0 0.0
      %730 = vmatpush1.msra.mxu0 0.0
      %731 = vmatprep.subr.mxu0 0.0
      %732 = vmatpush1.msra.mxu0 0.0
      %733 = vmatprep.subr.mxu0 0.0
      %734 = vmatpush1.msra.mxu0 0.0
      %735 = vmatprep.subr.mxu0 0.0
      %736 = vmatpush1.msra.mxu0 0.0
      %737 = vmatprep.subr.mxu0 %v700
      %738 = vmatpush1.msra.mxu0 %v699
      %739 = vmatprep.subr.mxu0 %v698
      %740 = vmatpush1.msra.mxu0 %v697
      %741 = vmatprep.subr.mxu0 %v696
      %742 = vmatpush1.msra.mxu0 %v695
      %743 = vmatprep.subr.mxu0 %v694
      %744 = vmatpush1.msra.mxu0 %v693
      %745 = vmatprep.subr.mxu0 %v692
      %746 = vmatpush1.msra.mxu0 %v691
      %747 = vmatprep.subr.mxu0 %v690
      %748 = vmatpush1.msra.mxu0 %v689
      %749 = vmatprep.subr.mxu0 %v688
      %750 = vmatpush1.msra.mxu0 %v687
      %751 = vmatprep.subr.mxu0 %v686
      %752 = vmatpush1.msra.mxu0 %v685
      %753 = vmatprep.subr.mxu0 %v684
      %754 = vmatpush1.msra.mxu0 %v683
      %755 = vmatprep.subr.mxu0 0.0
      %756 = vmatpush2.msra.mxu0 0.0
      %757 = vmatprep.subr.mxu0 0.0
      %758 = vmatpush2.msra.mxu0 0.0
      %759 = vmatprep.subr.mxu0 0.0
      %760 = vmatpush2.msra.mxu0 0.0
      %761 = vmatprep.subr.mxu0 0.0
      %762 = vmatpush2.msra.mxu0 0.0
      %763 = vmatprep.subr.mxu0 0.0
      %764 = vmatpush2.msra.mxu0 0.0
      %765 = vmatprep.subr.mxu0 0.0
      %766 = vmatpush2.msra.mxu0 0.0
      %767 = vmatprep.subr.mxu0 0.0
      %768 = vmatpush2.msra.mxu0 0.0
      %769 = vmatprep.subr.mxu0 0.0
      %770 = vmatpush2.msra.mxu0 0.0
      %771 = vmatprep.subr.mxu0 0.0
      %772 = vmatpush2.msra.mxu0 0.0
      %773 = vmatprep.subr.mxu0 0.0
      %774 = vmatpush2.msra.mxu0 0.0
      %775 = vmatprep.subr.mxu0 0.0
      %776 = vmatpush2.msra.mxu0 0.0
      %777 = vmatprep.subr.mxu0 0.0
      %778 = vmatpush2.msra.mxu0 0.0
      %779 = vmatprep.subr.mxu0 0.0
      %780 = vmatpush2.msra.mxu0 0.0
      %781 = vmatprep.subr.mxu0 0.0
      %782 = vmatpush2.msra.mxu0 0.0
      %783 = vmatprep.subr.mxu0 0.0
      %784 = vmatpush2.msra.mxu0 0.0
      %785 = vmatprep.subr.mxu0 0.0
      %786 = vmatpush2.msra.mxu0 0.0
      %787 = vmatprep.mubr.f32.mxu0 0.0
      %788 = vmatmul.mubr.f32.gmra.mxu0 %v721
      %v789 = vpop.f32.mrf.mxu0
      %v790 = vadd.f32 %v624, %v789
      %v791 = vpop.f32.mrf.mxu0
      %v792 = vadd.f32 %v624, %v791
      %793 = vdwg.mxu0
      %794 = vst [vmem:[%s318] sm:$0xff] %v790
      %795 = vst [vmem:[%s318 + $0x8] sm:$0xff] %v792
      %v796 = vadd.f32 %v790, %v792
      %797 = vadd.xlane.f32.xlu0 %v796
      %v798 = vpop.xlane.xlu0 %797
      %799 = vst.msk [vmem:[%s322] sm:$0xff] %vm453, %v798
      %v800 = vmul.f32 %v790, %v790
      %v801 = vmul.f32 %v792, %v792
      %v802 = vadd.f32 %v800, %v801
      %803 = vadd.xlane.f32.xlu0 %v802
      %v804 = vpop.xlane.xlu0 %803
      %805 = vst.msk [vmem:[%s326] sm:$0xff] %vm453, %v804
      %p806 = scmp.lt.s32.totalorder %s20, 1
      %s807 = scalar_select %p806, %s20, 1
      %s808 = smul.addr %s807, 2
      %s809 = smul.addr %s808, 8
      %s810 = scalar_lea.vmem %s6, %s809
      %p811 = scmp.lt.s32.totalorder %s20, 1
      %s812 = scalar_select %p811, %s20, 1
      %s813 = smul.addr %s812, 8
      %s814 = scalar_lea.vmem %s7, %s813
      %p815 = scmp.lt.s32.totalorder %s20, 1
      %s816 = scalar_select %p815, %s20, 1
      %s817 = smul.addr %s816, 8
      %s818 = scalar_lea.vmem %s8, %s817
      // Predicated region
      $region45: #{double_conv_pallas.4} parent=43 // pred_check
        %p819 = pneg %p169
      $region46: #{double_conv_pallas.4} parent=43 // pred_check_branch
        %821 = sbr.rel (%p819) target = $region48
      $region47: #{double_conv_pallas.4} parent=43 // pred_region
        _
      $region48: #{double_conv_pallas.4} parent=43 // pred_fallthru
        _
      // Predicated region
      $region49: #{double_conv_pallas.4} parent=43 // pred_check
        %p822 = pneg %p195
      $region50: #{double_conv_pallas.4} parent=43 // pred_check_branch
        %824 = sbr.rel (%p822) target = $region52
      $region51: #{double_conv_pallas.4} parent=43 // pred_region
        _
      $region52: #{double_conv_pallas.4} parent=43 // pred_fallthru
        _
      // Predicated region
      $region53: #{double_conv_pallas.4} parent=43 // pred_check
        %p825 = pneg %p221
      $region54: #{double_conv_pallas.4} parent=43 // pred_check_branch
        %827 = sbr.rel (%p825) target = $region56
      $region55: #{double_conv_pallas.4} parent=43 // pred_region
        _
      $region56: #{double_conv_pallas.4} parent=43 // pred_fallthru
        _
    $region44: #{double_conv_pallas.4} parent=5 // pred_fallthru
      _
    %p828 = scmp.le.s32.totalorder 2, %s15
    // Predicated region
    $region57: #{double_conv_pallas.4} parent=5 // pred_check
      %p829 = pneg %p828
    $region58: #{double_conv_pallas.4} parent=5 // pred_check_branch
      %831 = sbr.rel (%p829) target = $region60
    $region59: #{double_conv_pallas.4} parent=5 // pred_region
      %s832 = ssub.s32 %s15, 2
      // Predicated region
      $region61: #{double_conv_pallas.4} parent=59 // pred_check
        %p833 = pneg %p175
      $region62: #{double_conv_pallas.4} parent=59 // pred_check_branch
        %835 = sbr.rel (%p833) target = $region64
      $region63: #{double_conv_pallas.4} parent=59 // pred_region
        %p836 = scmp.lt.s32.totalorder %s21, 1
        %s837 = scalar_select %p836, %s21, 1
        %s838 = smul.addr %s837, 2
        %s839 = smul.addr %s838, 8
        %s840 = scalar_lea.vmem %s6, %s839
      $region64: #{double_conv_pallas.4} parent=59 // pred_fallthru
        _
      // Predicated region
      $region65: #{double_conv_pallas.4} parent=59 // pred_check
        %p841 = pneg %p201
      $region66: #{double_conv_pallas.4} parent=59 // pred_check_branch
        %843 = sbr.rel (%p841) target = $region68
      $region67: #{double_conv_pallas.4} parent=59 // pred_region
        %p844 = scmp.lt.s32.totalorder %s21, 1
        %s845 = scalar_select %p844, %s21, 1
        %s846 = smul.addr %s845, 8
        %s847 = scalar_lea.vmem %s7, %s846
      $region68: #{double_conv_pallas.4} parent=59 // pred_fallthru
        _
      // Predicated region
      $region69: #{double_conv_pallas.4} parent=59 // pred_check
        %p848 = pneg %p227
      $region70: #{double_conv_pallas.4} parent=59 // pred_check_branch
        %850 = sbr.rel (%p848) target = $region72
      $region71: #{double_conv_pallas.4} parent=59 // pred_region
        %p851 = scmp.lt.s32.totalorder %s21, 1
        %s852 = scalar_select %p851, %s21, 1
        %s853 = smul.addr %s852, 8
        %s854 = scalar_lea.vmem %s8, %s853
      $region72: #{double_conv_pallas.4} parent=59 // pred_fallthru
        _
    $region60: #{double_conv_pallas.4} parent=5 // pred_fallthru
      _
  $region6: #{double_conv_pallas.4} parent=0 // loop_footer
    %s19 = sadd.s32 1, %s15
  $region7: #{double_conv_pallas.4} parent=0 // loop_footer_branch
    %14 = sbr.rel target = $region3
  $region8: #{double_conv_pallas.4} parent=0 // loop_exit
    _

</llo_original>
